<compile_context>
chip_gen: v5e
topology: v5e:2x2
jax: 0.10.0
libtpu: 0.0.40
codegen_flags: <defaults>
</compile_context>

<pallas_src>
import math
from functools import lru_cache

import numpy as np
import jax
import jax.numpy as jnp
from jax import lax
from jax.experimental import pallas as pl
from jax.experimental.pallas import tpu as pltpu

HEADS = 2                       # MultiHeadSelfAttention(head_nums=2)
LN_EPS = 1e-5
F32_MIN = float(jnp.finfo(jnp.float32).min)
ROW_TILE = 512                  # ~85% of HBM roofline for mem-bound row tiles; the
                                # double-buffered working set at C=256 is a few MiB,
                                # comfortably inside v7x's 32 MiB scoped VMEM too.
USE_BF16_MXU = False            # opt-in bf16 MXU operands (f32 accumulate) for v6e/v7x;
                                # default False keeps the reference's forced-f32 math.
ATTN_VMEM_LIMIT = 48 * 1024 * 1024   # explicit scoped-VMEM ceiling (headroom < v7x 64 MiB)


def _mxu(x):
    return x.astype(jnp.bfloat16) if USE_BF16_MXU else x


# ============================= Pallas kernels ================================

def _ln_qkv_kernel(x_ref, g_ref, b_ref, w_ref, wb_ref, oq_ref, ok_ref, ov_ref):
    # x: [TM, C] -> LayerNorm over C -> @ W[C, 3C] + b, split into Q/K/V in-kernel.
    x = x_ref[...]
    mu = jnp.mean(x, axis=-1, keepdims=True)
    var = jnp.mean(jnp.square(x - mu), axis=-1, keepdims=True)
    xn = (x - mu) * lax.rsqrt(var + LN_EPS) * g_ref[...] + b_ref[...]
    qkv = (jnp.dot(_mxu(xn), _mxu(w_ref[...]), preferred_element_type=jnp.float32)
           + wb_ref[...])
    C = oq_ref.shape[-1]
    oq_ref[...] = qkv[:, :C]
    ok_ref[...] = qkv[:, C:2 * C]
    ov_ref[...] = qkv[:, 2 * C:]


def ln_qkv_rows(x_rows, gamma, beta, w, wb, row_tile=ROW_TILE):
    """LayerNorm(x_rows) @ w + wb -> (q_rows, k_rows, v_rows), row-tiled & pipelined."""
    M, C = x_rows.shape
    N = w.shape[1]
    TM = min(row_tile, M)
    out = jax.ShapeDtypeStruct((M, C), jnp.float32)
    row_spec = pl.BlockSpec((TM, C), lambda i: (i, 0))
    return pl.pallas_call(
        _ln_qkv_kernel,
        out_shape=(out, out, out),
        grid=(pl.cdiv(M, TM),),
        in_specs=[row_spec,
                  pl.BlockSpec((1, C), lambda i: (0, 0)),
                  pl.BlockSpec((1, C), lambda i: (0, 0)),
                  pl.BlockSpec((C, N), lambda i: (0, 0)),
                  pl.BlockSpec((1, N), lambda i: (0, 0))],
        out_specs=(row_spec, row_spec, row_spec),
        compiler_params=pltpu.CompilerParams(dimension_semantics=("parallel",)),
    )(x_rows, gamma.reshape(1, C), beta.reshape(1, C), w, wb.reshape(1, N))


def _linear_kernel(x_ref, w_ref, b_ref, o_ref):
    o_ref[...] = (jnp.dot(_mxu(x_ref[...]), _mxu(w_ref[...]),
                          preferred_element_type=jnp.float32) + b_ref[...])


def _linear_res_kernel(x_ref, w_ref, b_ref, r_ref, o_ref):
    # output projection with the residual add fused in (saves one [M,C] HBM pass)
    o_ref[...] = (jnp.dot(_mxu(x_ref[...]), _mxu(w_ref[...]),
                          preferred_element_type=jnp.float32)
                  + b_ref[...] + r_ref[...])


def linear_rows(x_rows, w_t, b, residual=None, row_tile=ROW_TILE):
    """y = x_rows @ w_t + b (+ residual),  w_t already [in, out],  row-tiled."""
    M, K = x_rows.shape
    N = w_t.shape[1]
    TM = min(row_tile, M)
    in_specs = [pl.BlockSpec((TM, K), lambda i: (i, 0)),
                pl.BlockSpec((K, N), lambda i: (0, 0)),
                pl.BlockSpec((1, N), lambda i: (0, 0))]
    args = [x_rows, w_t, b.reshape(1, N)]
    kernel = _linear_kernel
    if residual is not None:
        in_specs.append(pl.BlockSpec((TM, N), lambda i: (i, 0)))
        args.append(residual)
        kernel = _linear_res_kernel
    return pl.pallas_call(
        kernel,
        out_shape=jax.ShapeDtypeStruct((M, N), jnp.float32),
        grid=(pl.cdiv(M, TM),),
        in_specs=in_specs,
        out_specs=pl.BlockSpec((TM, N), lambda i: (i, 0)),
        compiler_params=pltpu.CompilerParams(dimension_semantics=("parallel",)),
    )(*args)


def _make_rel_attn_kernel(T, Lp, H, head_size):
    inv_scale = 1.0 / math.sqrt(float(head_size))
    # row t must read bd[t, j + (T-1) - t];  a rotate by (Lp - (T-1)) + t  (mod Lp)
    # realises exactly that for the kept columns j < T (pad region never read).
    shift = Lp - (T - 1)

    def kernel(q_ref, k_ref, v_ref, p_ref, bu_ref, bv_ref, m_ref, o_ref):
        # mask arrives pre-transposed as [1, T, 1]; it masks QUERY rows only
        # (exactly the torch broadcast of mask.unsqueeze(-1)).
        bad = m_ref[0] == 0.0                              # [T, 1]
        dn = (((1,), (1,)), ((), ()))                      # A @ B^T
        for h in range(H):                                 # H == 2, fully unrolled
            q = q_ref[0, h]                                # [T, Dh]
            # fold 1/sqrt(Dh) into the O(T*Dh) operands instead of the O(T^2) score
            qu = (q + bu_ref[0, h]) * inv_scale
            qv = (q + bv_ref[0, h]) * inv_scale
            ac = lax.dot_general(_mxu(qu), _mxu(k_ref[0, h]), dn,
                                 preferred_element_type=jnp.float32)   # [T, T]
            bd = lax.dot_general(_mxu(qv), _mxu(p_ref[0, h]), dn,
                                 preferred_element_type=jnp.float32)   # [T, Lp]
            # Transformer-XL relative shift, fused in-kernel (strided XLU lane rotate)
            bd = pltpu.roll(bd, shift, 1, stride=1, stride_axis=0)
            score = ac + bd[:, :T]
            # no pre-softmax F32_MIN fill: masked rows are zeroed post-softmax,
            # so the output is identical and one full [T,T] VPU pass is saved.
            score = score - jnp.max(score, axis=-1, keepdims=True)
            e = jnp.exp(score)
            probs = e * pl.reciprocal(jnp.sum(e, axis=-1, keepdims=True), approx=True)
            probs = jnp.where(bad, 0.0, probs)
            o_ref[0, h] = jnp.dot(_mxu(probs), _mxu(v_ref[0, h]),
                                  preferred_element_type=jnp.float32)
    return kernel


def rel_attention(q, k, v, pe_h, bias_u, bias_v, mask_t):
    """Fused relative-position attention.  q/k/v: [B, H, T, Dh], pe_h: [1, H, Lp, Dh],
    mask_t: [B, T, 1].  One grid step per batch; all heads handled in-kernel so the
    constant-index pe/bias blocks are DMA'd once instead of B*H times."""
    B, H, T, Dh = q.shape
    Lp = pe_h.shape[2]
    qkv_spec = pl.BlockSpec((1, H, T, Dh), lambda b: (b, 0, 0, 0))
    return pl.pallas_call(
        _make_rel_attn_kernel(T, Lp, H, Dh),
        out_shape=jax.ShapeDtypeStruct((B, H, T, Dh), jnp.float32),
        grid=(B,),
        in_specs=[qkv_spec, qkv_spec, qkv_spec,
                  pl.BlockSpec((1, H, Lp, Dh), lambda b: (0, 0, 0, 0)),
                  pl.BlockSpec((1, H, 1, Dh), lambda b: (0, 0, 0, 0)),
                  pl.BlockSpec((1, H, 1, Dh), lambda b: (0, 0, 0, 0)),
                  pl.BlockSpec((1, T, 1), lambda b: (b, 0, 0))],
        out_specs=qkv_spec,
        compiler_params=pltpu.CompilerParams(
            dimension_semantics=("parallel",),
            vmem_limit_bytes=ATTN_VMEM_LIMIT),
    )(q, k, v, pe_h, bias_u, bias_v, mask_t)


# ============================= glue (plain JAX) ==============================

@lru_cache(maxsize=8)
def _position_embedding_rows(channel, time):
    """Torch-faithful MultiHeadSelfAttention.get_position_embedding, built once per
    (C, T) in numpy (folded as a compile-time constant) and returned channel-last
    as [2T-1, C] so it feeds the row-tiled linear directly (no extra transpose)."""
    factor = np.arange(0, channel, 2, dtype=np.float32)[:, None]
    factor = np.power(np.float32(10000.0), -factor) * np.float32(channel)
    position = np.arange(0, time, dtype=np.float32)[None, :] * factor
    pos_pos = np.zeros((channel, time), np.float32)
    pos_neg = np.zeros((channel, time), np.float32)
    pos_pos[0::2, :] = np.sin(position)
    pos_pos[1::2, :] = np.cos(position)
    pos_neg[0::2, :] = np.sin(-position)
    pos_neg[1::2, :] = np.cos(-position)
    pos_pos = pos_pos[:, ::-1]
    pos_neg = pos_neg[:, 1:]
    pe = np.concatenate([pos_pos, pos_neg], axis=1)            # [C, 2T-1]
    return np.ascontiguousarray(pe.T)                          # [2T-1, C]


def mhsa_forward(p, x, mask):
    """x: [B, C, T], mask: [B, 1, T]  ->  [B, C, T]   (Pallas path)."""
    B, C, T = x.shape
    H = HEADS
    Dh = C // H
    M = B * T

    x_rows = jnp.transpose(x, (0, 2, 1)).reshape(M, C)         # NTC rows, lane = C

    # ---- fused LayerNorm + merged QKV projection (x read once, Q/K/V split in-kernel)
    q_rows, k_rows, v_rows = ln_qkv_rows(x_rows, p['ln_g'], p['ln_b'],
                                         p['w_qkv'], p['b_qkv'])          # 3 x [M, C]

    # torch's raw head reshape of the [B, C, T] tensor (kept bit-exact)
    def to_heads(rows):
        return jnp.transpose(rows.reshape(B, T, C), (0, 2, 1)).reshape(B, H, T, Dh)
    q, k, v = to_heads(q_rows), to_heads(k_rows), to_heads(v_rows)

    # ---- relative position embedding: compile-time constant, projected, padded
    pe_rows = jnp.asarray(_position_embedding_rows(C, T))      # [L, C], L = 2T-1
    L = pe_rows.shape[0]
    pe_proj = linear_rows(pe_rows, p['Wp_t'], p['bp'])         # [L, C]
    pe_h = jnp.transpose(pe_proj).reshape(H, L, Dh)            # torch raw reshape
    Lp = max(128, ((L + 127) // 128) * 128)                    # lane-dense pad
    pe_h = jnp.pad(pe_h, ((0, 0), (0, Lp - L), (0, 0)))[None]  # [1, H, Lp, Dh]

    # ---- fused scores + relative shift + masked softmax + P@V (one step per batch)
    mask_t = jnp.transpose(mask, (0, 2, 1))                    # [B, T, 1] query-row mask
    out4 = rel_attention(q, k, v, pe_h, p['bias_u'], p['bias_v'], mask_t)  # [B,H,T,Dh]

    # torch's raw output reshape, then output projection with the residual fused in
    y_rows = jnp.transpose(
        jnp.transpose(out4, (0, 2, 1, 3)).reshape(B, C, T), (0, 2, 1)).reshape(M, C)
    o_rows = linear_rows(y_rows, p['Wo_t'], p['bo'], residual=x_rows)      # [M, C]
    return jnp.transpose(o_rows.reshape(B, T, C), (0, 2, 1))


# ===================== pure-JAX reference (correctness oracle) ===============

def _relative_shift_ref(m):
    B, H, T, _ = m.shape
    zp = jnp.zeros((B, H, T, 1), m.dtype)
    mp = jnp.concatenate([zp, m], axis=-1).reshape(B, H, -1, T)
    return mp[:, :, 1:, :].reshape(B, H, T, -1)[:, :, :, :T]


def mhsa_reference(p, x, mask):
    """Direct jnp port of the PyTorch forward (no Pallas)."""
    B, C, T = x.shape
    H = HEADS
    Dh = C // H
    residual = x
    xt = jnp.transpose(x, (0, 2, 1))
    mu = jnp.mean(xt, -1, keepdims=True)
    var = jnp.mean(jnp.square(xt - mu), -1, keepdims=True)
    xn = (xt - mu) / jnp.sqrt(var + LN_EPS) * p['ln_g'] + p['ln_b']        # [B, T, C]

    def lin(z, W, b):
        return jnp.einsum('btc,oc->bto', z, W) + b

    def heads(z_btc):
        return jnp.transpose(z_btc, (0, 2, 1)).reshape(B, H, T, Dh)

    q = heads(lin(xn, p['Wq'], p['bq']))
    k = heads(lin(xn, p['Wk'], p['bk']))
    v = heads(lin(xn, p['Wv'], p['bv']))

    pe = jnp.asarray(_position_embedding_rows(C, T))                       # [L, C]
    pe = jnp.einsum('lc,oc->lo', pe, p['Wp']) + p['bp']                    # [L, C]
    pe = jnp.transpose(pe).reshape(H, -1, Dh)                              # [H, L, Dh]

    ac = jnp.einsum('bhtd,bhsd->bhts', q + p['bias_u'], k)
    bd = jnp.einsum('bhtd,hld->bhtl', q + p['bias_v'], pe)
    score = (_relative_shift_ref(bd) + ac) / jnp.sqrt(jnp.float32(Dh))
    bad = (mask == 0.0)[:, :, :, None]                                     # [B,1,T,1]
    score = jnp.where(bad, F32_MIN, score)
    probs = jax.nn.softmax(score, axis=-1)
    probs = jnp.where(bad, 0.0, probs)
    out = jnp.einsum('bhts,bhsd->bhtd', probs, v)
    out = jnp.transpose(out, (0, 2, 1, 3)).reshape(B, C, T)
    out = jnp.einsum('btc,oc->bto', jnp.transpose(out, (0, 2, 1)), p['Wo']) + p['bo']
    return jnp.transpose(out, (0, 2, 1)) + residual


# ============================= parameters ====================================

def init_params(key, C):
    H = HEADS
    Dh = C // H
    ks = iter(jax.random.split(key, 16))

    def lin(o, i):
        return (jax.random.normal(next(ks), (o, i), jnp.float32) * 0.05,
                jax.random.normal(next(ks), (o,), jnp.float32) * 0.01)

    Wq, bq = lin(C, C)
    Wk, bk = lin(C, C)
    Wv, bv = lin(C, C)
    Wp, bp = lin(C, C)
    Wo, bo = lin(C, C)
    return {
        'ln_g': jnp.ones((C,), jnp.float32),
        'ln_b': jnp.zeros((C,), jnp.float32),
        'Wq': Wq, 'bq': bq, 'Wk': Wk, 'bk': bk, 'Wv': Wv, 'bv': bv,
        'Wp': Wp, 'bp': bp, 'Wo': Wo, 'bo': bo,
        'bias_u': jax.random.normal(next(ks), (1, H, 1, Dh), jnp.float32) * 0.05,
        'bias_v': jax.random.normal(next(ks), (1, H, 1, Dh), jnp.float32) * 0.05,
    }


def prepare_params(p):
    """One-time weight packing / transposition, hoisted out of the jitted forward."""
    q = dict(p)
    q['w_qkv'] = jnp.concatenate([p['Wq'].T, p['Wk'].T, p['Wv'].T], axis=1)   # [C, 3C]
    q['b_qkv'] = jnp.concatenate([p['bq'], p['bk'], p['bv']])                 # [3C]
    q['Wp_t'] = p['Wp'].T
    q['Wo_t'] = p['Wo'].T
    return q


# ============================= main ==========================================

if __name__ == "__main__":
    B, C, T = 2, 256, 16            # module default channels=256, head_nums=2
    key = jax.random.PRNGKey(0)
    kx, kp = jax.random.split(key)
    x = jax.random.normal(kx, (B, C, T), jnp.float32)       # [batch, channel, time]
    lengths = jnp.array([T, 10], jnp.int32)
    mask = (jnp.arange(T)[None, :] < lengths[:, None]).astype(jnp.float32)[:, None, :]

    params = prepare_params(init_params(kp, C))

    out = jax.block_until_ready(jax.jit(mhsa_forward)(params, x, mask))
    ref = jax.block_until_ready(jax.jit(mhsa_reference)(params, x, mask))

    assert out.shape == (B, C, T), out.shape
    assert bool(jnp.all(jnp.isfinite(out)))
    err = float(jnp.max(jnp.abs(out - ref)))
    # tolerance covers the approximate EUP reciprocal used in the fused softmax
    assert err < 2e-2, f"mismatch vs pure-JAX reference: {err}"
    print("KERNEL_OK")
</pallas_src>

<mosaic_0001>
module attributes {stable_mosaic.version = 11 : i64} {
  func.func @_ln_qkv_kernel(%arg0: i32, %arg1: memref<32x256xf32, #tpu.memory_space<vmem>>, %arg2: memref<1x256xf32, #tpu.memory_space<vmem>>, %arg3: memref<1x256xf32, #tpu.memory_space<vmem>>, %arg4: memref<256x768xf32, #tpu.memory_space<vmem>>, %arg5: memref<1x768xf32, #tpu.memory_space<vmem>>, %arg6: memref<32x256xf32, #tpu.memory_space<vmem>>, %arg7: memref<32x256xf32, #tpu.memory_space<vmem>>, %arg8: memref<32x256xf32, #tpu.memory_space<vmem>>) attributes {dimension_semantics = [#tpu.dimension_semantics<parallel>], iteration_bounds = array<i64: 1>, scalar_prefetch = 0 : i64, scratch_operands = 0 : i64, tpu.core_type = #tpu.core_type<tc>, window_params = [{transform_indices = @transform_0, window_bounds = array<i64: 32, 256>}, {pipeline_mode = #tpu.pipeline_mode<synchronous>, transform_indices = @transform_1, window_bounds = array<i64: 1, 256>}, {pipeline_mode = #tpu.pipeline_mode<synchronous>, transform_indices = @transform_2, window_bounds = array<i64: 1, 256>}, {pipeline_mode = #tpu.pipeline_mode<synchronous>, transform_indices = @transform_3, window_bounds = array<i64: 256, 768>}, {pipeline_mode = #tpu.pipeline_mode<synchronous>, transform_indices = @transform_4, window_bounds = array<i64: 1, 768>}, {transform_indices = @transform_5, window_bounds = array<i64: 32, 256>}, {transform_indices = @transform_6, window_bounds = array<i64: 32, 256>}, {transform_indices = @transform_7, window_bounds = array<i64: 32, 256>}]} {
    %c0 = arith.constant 0 : index
    %c0_0 = arith.constant 0 : index
    %0 = vector.load %arg1[%c0, %c0_0] : memref<32x256xf32, #tpu.memory_space<vmem>>, vector<32x256xf32>
    %cst = arith.constant dense<0.000000e+00> : vector<32xf32>
    %1 = vector.multi_reduction <add>, %0, %cst [1] : vector<32x256xf32> to vector<32xf32>
    %2 = vector.shape_cast %1 : vector<32xf32> to vector<32x1xf32>
    %cst_1 = arith.constant 2.560000e+02 : f32
    %3 = vector.broadcast %cst_1 : f32 to vector<32x1xf32>
    %4 = arith.divf %2, %3 : vector<32x1xf32>
    %5 = vector.broadcast %4 : vector<32x1xf32> to vector<32x256xf32>
    %6 = arith.subf %0, %5 : vector<32x256xf32>
    %7 = arith.mulf %6, %6 : vector<32x256xf32>
    %cst_2 = arith.constant dense<0.000000e+00> : vector<32xf32>
    %8 = vector.multi_reduction <add>, %7, %cst_2 [1] : vector<32x256xf32> to vector<32xf32>
    %9 = vector.shape_cast %8 : vector<32xf32> to vector<32x1xf32>
    %cst_3 = arith.constant 2.560000e+02 : f32
    %10 = vector.broadcast %cst_3 : f32 to vector<32x1xf32>
    %11 = arith.divf %9, %10 : vector<32x1xf32>
    %12 = vector.broadcast %4 : vector<32x1xf32> to vector<32x256xf32>
    %13 = arith.subf %0, %12 : vector<32x256xf32>
    %cst_4 = arith.constant 9.99999974E-6 : f32
    %14 = vector.broadcast %cst_4 : f32 to vector<32x1xf32>
    %15 = arith.addf %11, %14 : vector<32x1xf32>
    %16 = math.rsqrt %15 : vector<32x1xf32>
    %17 = vector.broadcast %16 : vector<32x1xf32> to vector<32x256xf32>
    %18 = arith.mulf %13, %17 : vector<32x256xf32>
    %c0_5 = arith.constant 0 : index
    %c0_6 = arith.constant 0 : index
    %19 = vector.load %arg2[%c0_5, %c0_6] : memref<1x256xf32, #tpu.memory_space<vmem>>, vector<1x256xf32>
    %20 = vector.broadcast %19 : vector<1x256xf32> to vector<32x256xf32>
    %21 = arith.mulf %18, %20 : vector<32x256xf32>
    %c0_7 = arith.constant 0 : index
    %c0_8 = arith.constant 0 : index
    %22 = vector.load %arg3[%c0_7, %c0_8] : memref<1x256xf32, #tpu.memory_space<vmem>>, vector<1x256xf32>
    %23 = vector.broadcast %22 : vector<1x256xf32> to vector<32x256xf32>
    %24 = arith.addf %21, %23 : vector<32x256xf32>
    %c0_9 = arith.constant 0 : index
    %c0_10 = arith.constant 0 : index
    %25 = vector.load %arg4[%c0_9, %c0_10] : memref<256x768xf32, #tpu.memory_space<vmem>>, vector<256x768xf32>
    %cst_11 = arith.constant dense<0.000000e+00> : vector<32x768xf32>
    %26 = tpu.matmul %24, %25, %cst_11 {dimension_numbers = #tpu.dot_dimension_numbers<[1], [0], [0], [1], [0, 0, 1, 1], [], []>} : vector<32x256xf32>, vector<256x768xf32>, vector<32x768xf32> -> vector<32x768xf32>
    %c0_12 = arith.constant 0 : index
    %c0_13 = arith.constant 0 : index
    %27 = vector.load %arg5[%c0_12, %c0_13] : memref<1x768xf32, #tpu.memory_space<vmem>>, vector<1x768xf32>
    %28 = vector.broadcast %27 : vector<1x768xf32> to vector<32x768xf32>
    %29 = arith.addf %26, %28 : vector<32x768xf32>
    %30 = vector.extract_strided_slice %29 {offsets = [0, 0], sizes = [32, 256], strides = [1, 1]} : vector<32x768xf32> to vector<32x256xf32>
    %c0_14 = arith.constant 0 : index
    %c0_15 = arith.constant 0 : index
    %31 = vector.load %arg6[%c0_14, %c0_15] : memref<32x256xf32, #tpu.memory_space<vmem>>, vector<32x256xf32>
    tpu.vector_store %arg6[%c0_14, %c0_15], %30 {strides = array<i32>} : memref<32x256xf32, #tpu.memory_space<vmem>>, vector<32x256xf32>,
    %32 = vector.extract_strided_slice %29 {offsets = [0, 256], sizes = [32, 256], strides = [1, 1]} : vector<32x768xf32> to vector<32x256xf32>
    %c0_16 = arith.constant 0 : index
    %c0_17 = arith.constant 0 : index
    %33 = vector.load %arg7[%c0_16, %c0_17] : memref<32x256xf32, #tpu.memory_space<vmem>>, vector<32x256xf32>
    tpu.vector_store %arg7[%c0_16, %c0_17], %32 {strides = array<i32>} : memref<32x256xf32, #tpu.memory_space<vmem>>, vector<32x256xf32>,
    %34 = vector.extract_strided_slice %29 {offsets = [0, 512], sizes = [32, 256], strides = [1, 1]} : vector<32x768xf32> to vector<32x256xf32>
    %c0_18 = arith.constant 0 : index
    %c0_19 = arith.constant 0 : index
    %35 = vector.load %arg8[%c0_18, %c0_19] : memref<32x256xf32, #tpu.memory_space<vmem>>, vector<32x256xf32>
    tpu.vector_store %arg8[%c0_18, %c0_19], %34 {strides = array<i32>} : memref<32x256xf32, #tpu.memory_space<vmem>>, vector<32x256xf32>,
    return
  }
  func.func @transform_0(%arg0: i32) -> (i32, i32) {
    %c0_i32 = arith.constant 0 : i32
    %c0_i32_0 = arith.constant 0 : i32
    return %arg0, %c0_i32 : i32, i32
  }
  func.func @transform_1(%arg0: i32) -> (i32, i32) {
    %c0_i32 = arith.constant 0 : i32
    %c0_i32_0 = arith.constant 0 : i32
    %c0_i32_1 = arith.constant 0 : i32
    return %c0_i32, %c0_i32_0 : i32, i32
  }
  func.func @transform_2(%arg0: i32) -> (i32, i32) {
    %c0_i32 = arith.constant 0 : i32
    %c0_i32_0 = arith.constant 0 : i32
    %c0_i32_1 = arith.constant 0 : i32
    return %c0_i32, %c0_i32_0 : i32, i32
  }
  func.func @transform_3(%arg0: i32) -> (i32, i32) {
    %c0_i32 = arith.constant 0 : i32
    %c0_i32_0 = arith.constant 0 : i32
    %c0_i32_1 = arith.constant 0 : i32
    return %c0_i32, %c0_i32_0 : i32, i32
  }
  func.func @transform_4(%arg0: i32) -> (i32, i32) {
    %c0_i32 = arith.constant 0 : i32
    %c0_i32_0 = arith.constant 0 : i32
    %c0_i32_1 = arith.constant 0 : i32
    return %c0_i32, %c0_i32_0 : i32, i32
  }
  func.func @transform_5(%arg0: i32) -> (i32, i32) {
    %c0_i32 = arith.constant 0 : i32
    %c0_i32_0 = arith.constant 0 : i32
    return %arg0, %c0_i32 : i32, i32
  }
  func.func @transform_6(%arg0: i32) -> (i32, i32) {
    %c0_i32 = arith.constant 0 : i32
    %c0_i32_0 = arith.constant 0 : i32
    return %arg0, %c0_i32 : i32, i32
  }
  func.func @transform_7(%arg0: i32) -> (i32, i32) {
    %c0_i32 = arith.constant 0 : i32
    %c0_i32_0 = arith.constant 0 : i32
    return %arg0, %c0_i32 : i32, i32
  }
}

module attributes {stable_mosaic.version = 11 : i64} {
  func.func @_linear_kernel(%arg0: i32, %arg1: memref<31x256xf32, #tpu.memory_space<vmem>>, %arg2: memref<256x256xf32, #tpu.memory_space<vmem>>, %arg3: memref<1x256xf32, #tpu.memory_space<vmem>>, %arg4: memref<31x256xf32, #tpu.memory_space<vmem>>) attributes {dimension_semantics = [#tpu.dimension_semantics<parallel>], iteration_bounds = array<i64: 1>, scalar_prefetch = 0 : i64, scratch_operands = 0 : i64, tpu.core_type = #tpu.core_type<tc>, window_params = [{transform_indices = @transform_0, window_bounds = array<i64: 31, 256>}, {pipeline_mode = #tpu.pipeline_mode<synchronous>, transform_indices = @transform_1, window_bounds = array<i64: 256, 256>}, {pipeline_mode = #tpu.pipeline_mode<synchronous>, transform_indices = @transform_2, window_bounds = array<i64: 1, 256>}, {transform_indices = @transform_3, window_bounds = array<i64: 31, 256>}]} {
    %c0 = arith.constant 0 : index
    %c0_0 = arith.constant 0 : index
    %0 = vector.load %arg1[%c0, %c0_0] : memref<31x256xf32, #tpu.memory_space<vmem>>, vector<31x256xf32>
    %c0_1 = arith.constant 0 : index
    %c0_2 = arith.constant 0 : index
    %1 = vector.load %arg2[%c0_1, %c0_2] : memref<256x256xf32, #tpu.memory_space<vmem>>, vector<256x256xf32>
    %cst = arith.constant dense<0.000000e+00> : vector<31x256xf32>
    %2 = tpu.matmul %0, %1, %cst {dimension_numbers = #tpu.dot_dimension_numbers<[1], [0], [0], [1], [0, 0, 1, 1], [], []>} : vector<31x256xf32>, vector<256x256xf32>, vector<31x256xf32> -> vector<31x256xf32>
    %c0_3 = arith.constant 0 : index
    %c0_4 = arith.constant 0 : index
    %3 = vector.load %arg3[%c0_3, %c0_4] : memref<1x256xf32, #tpu.memory_space<vmem>>, vector<1x256xf32>
    %4 = vector.broadcast %3 : vector<1x256xf32> to vector<31x256xf32>
    %5 = arith.addf %2, %4 : vector<31x256xf32>
    %c0_5 = arith.constant 0 : index
    %c0_6 = arith.constant 0 : index
    %6 = vector.load %arg4[%c0_5, %c0_6] : memref<31x256xf32, #tpu.memory_space<vmem>>, vector<31x256xf32>
    tpu.vector_store %arg4[%c0_5, %c0_6], %5 {strides = array<i32>} : memref<31x256xf32, #tpu.memory_space<vmem>>, vector<31x256xf32>,
    return
  }
  func.func @transform_0(%arg0: i32) -> (i32, i32) {
    %c0_i32 = arith.constant 0 : i32
    %c0_i32_0 = arith.constant 0 : i32
    return %arg0, %c0_i32 : i32, i32
  }
  func.func @transform_1(%arg0: i32) -> (i32, i32) {
    %c0_i32 = arith.constant 0 : i32
    %c0_i32_0 = arith.constant 0 : i32
    %c0_i32_1 = arith.constant 0 : i32
    return %c0_i32, %c0_i32_0 : i32, i32
  }
  func.func @transform_2(%arg0: i32) -> (i32, i32) {
    %c0_i32 = arith.constant 0 : i32
    %c0_i32_0 = arith.constant 0 : i32
    %c0_i32_1 = arith.constant 0 : i32
    return %c0_i32, %c0_i32_0 : i32, i32
  }
  func.func @transform_3(%arg0: i32) -> (i32, i32) {
    %c0_i32 = arith.constant 0 : i32
    %c0_i32_0 = arith.constant 0 : i32
    return %arg0, %c0_i32 : i32, i32
  }
}

module attributes {stable_mosaic.version = 11 : i64} {
  func.func @kernel(%arg0: i32, %arg1: memref<1x2x16x128xf32, #tpu.memory_space<vmem>>, %arg2: memref<1x2x16x128xf32, #tpu.memory_space<vmem>>, %arg3: memref<1x2x16x128xf32, #tpu.memory_space<vmem>>, %arg4: memref<1x2x128x128xf32, #tpu.memory_space<vmem>>, %arg5: memref<1x2x1x128xf32, #tpu.memory_space<vmem>>, %arg6: memref<1x2x1x128xf32, #tpu.memory_space<vmem>>, %arg7: memref<1x16x1xf32, #tpu.memory_space<vmem>>, %arg8: memref<1x2x16x128xf32, #tpu.memory_space<vmem>>) attributes {dimension_semantics = [#tpu.dimension_semantics<parallel>], iteration_bounds = array<i64: 2>, scalar_prefetch = 0 : i64, scratch_operands = 0 : i64, tpu.core_type = #tpu.core_type<tc>, window_params = [{transform_indices = @transform_0, window_bounds = array<i64: 1, 2, 16, 128>}, {transform_indices = @transform_1, window_bounds = array<i64: 1, 2, 16, 128>}, {transform_indices = @transform_2, window_bounds = array<i64: 1, 2, 16, 128>}, {pipeline_mode = #tpu.pipeline_mode<synchronous>, transform_indices = @transform_3, window_bounds = array<i64: 1, 2, 128, 128>}, {pipeline_mode = #tpu.pipeline_mode<synchronous>, transform_indices = @transform_4, window_bounds = array<i64: 1, 2, 1, 128>}, {pipeline_mode = #tpu.pipeline_mode<synchronous>, transform_indices = @transform_5, window_bounds = array<i64: 1, 2, 1, 128>}, {transform_indices = @transform_6, window_bounds = array<i64: 1, 16, 1>}, {transform_indices = @transform_7, window_bounds = array<i64: 1, 2, 16, 128>}]} {
    %c0 = arith.constant 0 : index
    %c0_0 = arith.constant 0 : index
    %c0_1 = arith.constant 0 : index
    %0 = vector.load %arg7[%c0, %c0_0, %c0_1] : memref<1x16x1xf32, #tpu.memory_space<vmem>>, vector<1x16x1xf32>
    %1 = vector.shape_cast %0 : vector<1x16x1xf32> to vector<16x1xf32>
    %cst = arith.constant 0.000000e+00 : f32
    %2 = vector.broadcast %cst : f32 to vector<16x1xf32>
    %3 = arith.cmpf oeq, %1, %2 : vector<16x1xf32>
    %c0_2 = arith.constant 0 : index
    %c0_3 = arith.constant 0 : index
    %c0_4 = arith.constant 0 : index
    %c0_5 = arith.constant 0 : index
    %4 = vector.load %arg1[%c0_2, %c0_3, %c0_4, %c0_5] : memref<1x2x16x128xf32, #tpu.memory_space<vmem>>, vector<1x1x16x128xf32>
    %5 = vector.shape_cast %4 : vector<1x1x16x128xf32> to vector<16x128xf32>
    %c0_6 = arith.constant 0 : index
    %c0_7 = arith.constant 0 : index
    %c0_8 = arith.constant 0 : index
    %c0_9 = arith.constant 0 : index
    %6 = vector.load %arg5[%c0_6, %c0_7, %c0_8, %c0_9] : memref<1x2x1x128xf32, #tpu.memory_space<vmem>>, vector<1x1x1x128xf32>
    %7 = vector.shape_cast %6 : vector<1x1x1x128xf32> to vector<1x128xf32>
    %8 = vector.broadcast %7 : vector<1x128xf32> to vector<16x128xf32>
    %9 = arith.addf %5, %8 : vector<16x128xf32>
    %cst_10 = arith.constant 0.0883883461 : f32
    %10 = vector.broadcast %cst_10 : f32 to vector<16x128xf32>
    %11 = arith.mulf %9, %10 : vector<16x128xf32>
    %c0_11 = arith.constant 0 : index
    %c0_12 = arith.constant 0 : index
    %c0_13 = arith.constant 0 : index
    %c0_14 = arith.constant 0 : index
    %12 = vector.load %arg6[%c0_11, %c0_12, %c0_13, %c0_14] : memref<1x2x1x128xf32, #tpu.memory_space<vmem>>, vector<1x1x1x128xf32>
    %13 = vector.shape_cast %12 : vector<1x1x1x128xf32> to vector<1x128xf32>
    %14 = vector.broadcast %13 : vector<1x128xf32> to vector<16x128xf32>
    %15 = arith.addf %5, %14 : vector<16x128xf32>
    %cst_15 = arith.constant 0.0883883461 : f32
    %16 = vector.broadcast %cst_15 : f32 to vector<16x128xf32>
    %17 = arith.mulf %15, %16 : vector<16x128xf32>
    %c0_16 = arith.constant 0 : index
    %c0_17 = arith.constant 0 : index
    %c0_18 = arith.constant 0 : index
    %c0_19 = arith.constant 0 : index
    %18 = vector.load %arg2[%c0_16, %c0_17, %c0_18, %c0_19] : memref<1x2x16x128xf32, #tpu.memory_space<vmem>>, vector<1x1x16x128xf32>
    %19 = vector.shape_cast %18 : vector<1x1x16x128xf32> to vector<16x128xf32>
    %cst_20 = arith.constant dense<0.000000e+00> : vector<16x16xf32>
    %20 = tpu.matmul %11, %19, %cst_20 {dimension_numbers = #tpu.dot_dimension_numbers<[1], [1], [0], [0], [0, 0, 1, 0], [], []>} : vector<16x128xf32>, vector<16x128xf32>, vector<16x16xf32> -> vector<16x16xf32>
    %c0_21 = arith.constant 0 : index
    %c0_22 = arith.constant 0 : index
    %c0_23 = arith.constant 0 : index
    %c0_24 = arith.constant 0 : index
    %21 = vector.load %arg4[%c0_21, %c0_22, %c0_23, %c0_24] : memref<1x2x128x128xf32, #tpu.memory_space<vmem>>, vector<1x1x128x128xf32>
    %22 = vector.shape_cast %21 : vector<1x1x128x128xf32> to vector<128x128xf32>
    %cst_25 = arith.constant dense<0.000000e+00> : vector<16x128xf32>
    %23 = tpu.matmul %17, %22, %cst_25 {dimension_numbers = #tpu.dot_dimension_numbers<[1], [1], [0], [0], [0, 0, 1, 0], [], []>} : vector<16x128xf32>, vector<128x128xf32>, vector<16x128xf32> -> vector<16x128xf32>
    %c113_i32 = arith.constant 113 : i32
    %24 = tpu.dynamic_rotate %23 by %c113_i32 dim 1 {stride = 1 : si32, stride_dimension = 0 : si32} : vector<16x128xf32>, i32 -> vector<16x128xf32>
    %25 = vector.extract_strided_slice %24 {offsets = [0, 0], sizes = [16, 16], strides = [1, 1]} : vector<16x128xf32> to vector<16x16xf32>
    %26 = arith.addf %20, %25 : vector<16x16xf32>
    %cst_26 = arith.constant dense<0xFF800000> : vector<16xf32>
    %27 = vector.multi_reduction <maximumf>, %26, %cst_26 [1] : vector<16x16xf32> to vector<16xf32>
    %28 = vector.shape_cast %27 : vector<16xf32> to vector<16x1xf32>
    %29 = vector.broadcast %28 : vector<16x1xf32> to vector<16x16xf32>
    %30 = arith.subf %26, %29 : vector<16x16xf32>
    %31 = math.exp %30 : vector<16x16xf32>
    %cst_27 = arith.constant dense<0.000000e+00> : vector<16xf32>
    %32 = vector.multi_reduction <add>, %31, %cst_27 [1] : vector<16x16xf32> to vector<16xf32>
    %33 = vector.shape_cast %32 : vector<16xf32> to vector<16x1xf32>
    %34 = tpu.reciprocal %33 {approx = true} : vector<16x1xf32> -> vector<16x1xf32>
    %35 = vector.broadcast %34 : vector<16x1xf32> to vector<16x16xf32>
    %36 = arith.mulf %31, %35 : vector<16x16xf32>
    %cst_28 = arith.constant 0.000000e+00 : f32
    %37 = vector.shape_cast %3 : vector<16x1xi1> to vector<16x1xi1>
    %38 = vector.broadcast %37 : vector<16x1xi1> to vector<16x16xi1>
    %39 = vector.broadcast %cst_28 : f32 to vector<16x16xf32>
    %40 = arith.select %38, %39, %36 : vector<16x16xi1>, vector<16x16xf32>
    %c0_29 = arith.constant 0 : index
    %c0_30 = arith.constant 0 : index
    %c0_31 = arith.constant 0 : index
    %c0_32 = arith.constant 0 : index
    %41 = vector.load %arg3[%c0_29, %c0_30, %c0_31, %c0_32] : memref<1x2x16x128xf32, #tpu.memory_space<vmem>>, vector<1x1x16x128xf32>
    %42 = vector.shape_cast %41 : vector<1x1x16x128xf32> to vector<16x128xf32>
    %cst_33 = arith.constant dense<0.000000e+00> : vector<16x128xf32>
    %43 = tpu.matmul %40, %42, %cst_33 {dimension_numbers = #tpu.dot_dimension_numbers<[1], [0], [0], [1], [0, 0, 1, 1], [], []>} : vector<16x16xf32>, vector<16x128xf32>, vector<16x128xf32> -> vector<16x128xf32>
    %c0_34 = arith.constant 0 : index
    %c0_35 = arith.constant 0 : index
    %c0_36 = arith.constant 0 : index
    %c0_37 = arith.constant 0 : index
    %44 = vector.load %arg8[%c0_34, %c0_35, %c0_36, %c0_37] : memref<1x2x16x128xf32, #tpu.memory_space<vmem>>, vector<1x1x16x128xf32>
    %45 = vector.shape_cast %44 : vector<1x1x16x128xf32> to vector<16x128xf32>
    %46 = vector.shape_cast %43 : vector<16x128xf32> to vector<1x1x16x128xf32>
    tpu.vector_store %arg8[%c0_34, %c0_35, %c0_36, %c0_37], %46 {strides = array<i32>} : memref<1x2x16x128xf32, #tpu.memory_space<vmem>>, vector<1x1x16x128xf32>,
    %c0_38 = arith.constant 0 : index
    %c1 = arith.constant 1 : index
    %c0_39 = arith.constant 0 : index
    %c0_40 = arith.constant 0 : index
    %47 = vector.load %arg1[%c0_38, %c1, %c0_39, %c0_40] : memref<1x2x16x128xf32, #tpu.memory_space<vmem>>, vector<1x1x16x128xf32>
    %48 = vector.shape_cast %47 : vector<1x1x16x128xf32> to vector<16x128xf32>
    %c0_41 = arith.constant 0 : index
    %c1_42 = arith.constant 1 : index
    %c0_43 = arith.constant 0 : index
    %c0_44 = arith.constant 0 : index
    %49 = vector.load %arg5[%c0_41, %c1_42, %c0_43, %c0_44] : memref<1x2x1x128xf32, #tpu.memory_space<vmem>>, vector<1x1x1x128xf32>
    %50 = vector.shape_cast %49 : vector<1x1x1x128xf32> to vector<1x128xf32>
    %51 = vector.broadcast %50 : vector<1x128xf32> to vector<16x128xf32>
    %52 = arith.addf %48, %51 : vector<16x128xf32>
    %cst_45 = arith.constant 0.0883883461 : f32
    %53 = vector.broadcast %cst_45 : f32 to vector<16x128xf32>
    %54 = arith.mulf %52, %53 : vector<16x128xf32>
    %c0_46 = arith.constant 0 : index
    %c1_47 = arith.constant 1 : index
    %c0_48 = arith.constant 0 : index
    %c0_49 = arith.constant 0 : index
    %55 = vector.load %arg6[%c0_46, %c1_47, %c0_48, %c0_49] : memref<1x2x1x128xf32, #tpu.memory_space<vmem>>, vector<1x1x1x128xf32>
    %56 = vector.shape_cast %55 : vector<1x1x1x128xf32> to vector<1x128xf32>
    %57 = vector.broadcast %56 : vector<1x128xf32> to vector<16x128xf32>
    %58 = arith.addf %48, %57 : vector<16x128xf32>
    %cst_50 = arith.constant 0.0883883461 : f32
    %59 = vector.broadcast %cst_50 : f32 to vector<16x128xf32>
    %60 = arith.mulf %58, %59 : vector<16x128xf32>
    %c0_51 = arith.constant 0 : index
    %c1_52 = arith.constant 1 : index
    %c0_53 = arith.constant 0 : index
    %c0_54 = arith.constant 0 : index
    %61 = vector.load %arg2[%c0_51, %c1_52, %c0_53, %c0_54] : memref<1x2x16x128xf32, #tpu.memory_space<vmem>>, vector<1x1x16x128xf32>
    %62 = vector.shape_cast %61 : vector<1x1x16x128xf32> to vector<16x128xf32>
    %cst_55 = arith.constant dense<0.000000e+00> : vector<16x16xf32>
    %63 = tpu.matmul %54, %62, %cst_55 {dimension_numbers = #tpu.dot_dimension_numbers<[1], [1], [0], [0], [0, 0, 1, 0], [], []>} : vector<16x128xf32>, vector<16x128xf32>, vector<16x16xf32> -> vector<16x16xf32>
    %c0_56 = arith.constant 0 : index
    %c1_57 = arith.constant 1 : index
    %c0_58 = arith.constant 0 : index
    %c0_59 = arith.constant 0 : index
    %64 = vector.load %arg4[%c0_56, %c1_57, %c0_58, %c0_59] : memref<1x2x128x128xf32, #tpu.memory_space<vmem>>, vector<1x1x128x128xf32>
    %65 = vector.shape_cast %64 : vector<1x1x128x128xf32> to vector<128x128xf32>
    %cst_60 = arith.constant dense<0.000000e+00> : vector<16x128xf32>
    %66 = tpu.matmul %60, %65, %cst_60 {dimension_numbers = #tpu.dot_dimension_numbers<[1], [1], [0], [0], [0, 0, 1, 0], [], []>} : vector<16x128xf32>, vector<128x128xf32>, vector<16x128xf32> -> vector<16x128xf32>
    %c113_i32_61 = arith.constant 113 : i32
    %67 = tpu.dynamic_rotate %66 by %c113_i32_61 dim 1 {stride = 1 : si32, stride_dimension = 0 : si32} : vector<16x128xf32>, i32 -> vector<16x128xf32>
    %68 = vector.extract_strided_slice %67 {offsets = [0, 0], sizes = [16, 16], strides = [1, 1]} : vector<16x128xf32> to vector<16x16xf32>
    %69 = arith.addf %63, %68 : vector<16x16xf32>
    %cst_62 = arith.constant dense<0xFF800000> : vector<16xf32>
    %70 = vector.multi_reduction <maximumf>, %69, %cst_62 [1] : vector<16x16xf32> to vector<16xf32>
    %71 = vector.shape_cast %70 : vector<16xf32> to vector<16x1xf32>
    %72 = vector.broadcast %71 : vector<16x1xf32> to vector<16x16xf32>
    %73 = arith.subf %69, %72 : vector<16x16xf32>
    %74 = math.exp %73 : vector<16x16xf32>
    %cst_63 = arith.constant dense<0.000000e+00> : vector<16xf32>
    %75 = vector.multi_reduction <add>, %74, %cst_63 [1] : vector<16x16xf32> to vector<16xf32>
    %76 = vector.shape_cast %75 : vector<16xf32> to vector<16x1xf32>
    %77 = tpu.reciprocal %76 {approx = true} : vector<16x1xf32> -> vector<16x1xf32>
    %78 = vector.broadcast %77 : vector<16x1xf32> to vector<16x16xf32>
    %79 = arith.mulf %74, %78 : vector<16x16xf32>
    %cst_64 = arith.constant 0.000000e+00 : f32
    %80 = vector.shape_cast %3 : vector<16x1xi1> to vector<16x1xi1>
    %81 = vector.broadcast %80 : vector<16x1xi1> to vector<16x16xi1>
    %82 = vector.broadcast %cst_64 : f32 to vector<16x16xf32>
    %83 = arith.select %81, %82, %79 : vector<16x16xi1>, vector<16x16xf32>
    %c0_65 = arith.constant 0 : index
    %c1_66 = arith.constant 1 : index
    %c0_67 = arith.constant 0 : index
    %c0_68 = arith.constant 0 : index
    %84 = vector.load %arg3[%c0_65, %c1_66, %c0_67, %c0_68] : memref<1x2x16x128xf32, #tpu.memory_space<vmem>>, vector<1x1x16x128xf32>
    %85 = vector.shape_cast %84 : vector<1x1x16x128xf32> to vector<16x128xf32>
    %cst_69 = arith.constant dense<0.000000e+00> : vector<16x128xf32>
    %86 = tpu.matmul %83, %85, %cst_69 {dimension_numbers = #tpu.dot_dimension_numbers<[1], [0], [0], [1], [0, 0, 1, 1], [], []>} : vector<16x16xf32>, vector<16x128xf32>, vector<16x128xf32> -> vector<16x128xf32>
    %c0_70 = arith.constant 0 : index
    %c1_71 = arith.constant 1 : index
    %c0_72 = arith.constant 0 : index
    %c0_73 = arith.constant 0 : index
    %87 = vector.load %arg8[%c0_70, %c1_71, %c0_72, %c0_73] : memref<1x2x16x128xf32, #tpu.memory_space<vmem>>, vector<1x1x16x128xf32>
    %88 = vector.shape_cast %87 : vector<1x1x16x128xf32> to vector<16x128xf32>
    %89 = vector.shape_cast %86 : vector<16x128xf32> to vector<1x1x16x128xf32>
    tpu.vector_store %arg8[%c0_70, %c1_71, %c0_72, %c0_73], %89 {strides = array<i32>} : memref<1x2x16x128xf32, #tpu.memory_space<vmem>>, vector<1x1x16x128xf32>,
    return
  }
  func.func @transform_0(%arg0: i32) -> (i32, i32, i32, i32) {
    %c0_i32 = arith.constant 0 : i32
    %c0_i32_0 = arith.constant 0 : i32
    %c0_i32_1 = arith.constant 0 : i32
    %c0_i32_2 = arith.constant 0 : i32
    return %arg0, %c0_i32, %c0_i32_0, %c0_i32_1 : i32, i32, i32, i32
  }
  func.func @transform_1(%arg0: i32) -> (i32, i32, i32, i32) {
    %c0_i32 = arith.constant 0 : i32
    %c0_i32_0 = arith.constant 0 : i32
    %c0_i32_1 = arith.constant 0 : i32
    %c0_i32_2 = arith.constant 0 : i32
    return %arg0, %c0_i32, %c0_i32_0, %c0_i32_1 : i32, i32, i32, i32
  }
  func.func @transform_2(%arg0: i32) -> (i32, i32, i32, i32) {
    %c0_i32 = arith.constant 0 : i32
    %c0_i32_0 = arith.constant 0 : i32
    %c0_i32_1 = arith.constant 0 : i32
    %c0_i32_2 = arith.constant 0 : i32
    return %arg0, %c0_i32, %c0_i32_0, %c0_i32_1 : i32, i32, i32, i32
  }
  func.func @transform_3(%arg0: i32) -> (i32, i32, i32, i32) {
    %c0_i32 = arith.constant 0 : i32
    %c0_i32_0 = arith.constant 0 : i32
    %c0_i32_1 = arith.constant 0 : i32
    %c0_i32_2 = arith.constant 0 : i32
    %c0_i32_3 = arith.constant 0 : i32
    return %c0_i32, %c0_i32_0, %c0_i32_1, %c0_i32_2 : i32, i32, i32, i32
  }
  func.func @transform_4(%arg0: i32) -> (i32, i32, i32, i32) {
    %c0_i32 = arith.constant 0 : i32
    %c0_i32_0 = arith.constant 0 : i32
    %c0_i32_1 = arith.constant 0 : i32
    %c0_i32_2 = arith.constant 0 : i32
    %c0_i32_3 = arith.constant 0 : i32
    return %c0_i32, %c0_i32_0, %c0_i32_1, %c0_i32_2 : i32, i32, i32, i32
  }
  func.func @transform_5(%arg0: i32) -> (i32, i32, i32, i32) {
    %c0_i32 = arith.constant 0 : i32
    %c0_i32_0 = arith.constant 0 : i32
    %c0_i32_1 = arith.constant 0 : i32
    %c0_i32_2 = arith.constant 0 : i32
    %c0_i32_3 = arith.constant 0 : i32
    return %c0_i32, %c0_i32_0, %c0_i32_1, %c0_i32_2 : i32, i32, i32, i32
  }
  func.func @transform_6(%arg0: i32) -> (i32, i32, i32) {
    %c0_i32 = arith.constant 0 : i32
    %c0_i32_0 = arith.constant 0 : i32
    %c0_i32_1 = arith.constant 0 : i32
    return %arg0, %c0_i32, %c0_i32_0 : i32, i32, i32
  }
  func.func @transform_7(%arg0: i32) -> (i32, i32, i32, i32) {
    %c0_i32 = arith.constant 0 : i32
    %c0_i32_0 = arith.constant 0 : i32
    %c0_i32_1 = arith.constant 0 : i32
    %c0_i32_2 = arith.constant 0 : i32
    return %arg0, %c0_i32, %c0_i32_0, %c0_i32_1 : i32, i32, i32, i32
  }
}

module attributes {stable_mosaic.version = 11 : i64} {
  func.func @_linear_res_kernel(%arg0: i32, %arg1: memref<32x256xf32, #tpu.memory_space<vmem>>, %arg2: memref<256x256xf32, #tpu.memory_space<vmem>>, %arg3: memref<1x256xf32, #tpu.memory_space<vmem>>, %arg4: memref<32x256xf32, #tpu.memory_space<vmem>>, %arg5: memref<32x256xf32, #tpu.memory_space<vmem>>) attributes {dimension_semantics = [#tpu.dimension_semantics<parallel>], iteration_bounds = array<i64: 1>, scalar_prefetch = 0 : i64, scratch_operands = 0 : i64, tpu.core_type = #tpu.core_type<tc>, window_params = [{transform_indices = @transform_0, window_bounds = array<i64: 32, 256>}, {pipeline_mode = #tpu.pipeline_mode<synchronous>, transform_indices = @transform_1, window_bounds = array<i64: 256, 256>}, {pipeline_mode = #tpu.pipeline_mode<synchronous>, transform_indices = @transform_2, window_bounds = array<i64: 1, 256>}, {transform_indices = @transform_3, window_bounds = array<i64: 32, 256>}, {transform_indices = @transform_4, window_bounds = array<i64: 32, 256>}]} {
    %c0 = arith.constant 0 : index
    %c0_0 = arith.constant 0 : index
    %0 = vector.load %arg1[%c0, %c0_0] : memref<32x256xf32, #tpu.memory_space<vmem>>, vector<32x256xf32>
    %c0_1 = arith.constant 0 : index
    %c0_2 = arith.constant 0 : index
    %1 = vector.load %arg2[%c0_1, %c0_2] : memref<256x256xf32, #tpu.memory_space<vmem>>, vector<256x256xf32>
    %cst = arith.constant dense<0.000000e+00> : vector<32x256xf32>
    %2 = tpu.matmul %0, %1, %cst {dimension_numbers = #tpu.dot_dimension_numbers<[1], [0], [0], [1], [0, 0, 1, 1], [], []>} : vector<32x256xf32>, vector<256x256xf32>, vector<32x256xf32> -> vector<32x256xf32>
    %c0_3 = arith.constant 0 : index
    %c0_4 = arith.constant 0 : index
    %3 = vector.load %arg3[%c0_3, %c0_4] : memref<1x256xf32, #tpu.memory_space<vmem>>, vector<1x256xf32>
    %4 = vector.broadcast %3 : vector<1x256xf32> to vector<32x256xf32>
    %5 = arith.addf %2, %4 : vector<32x256xf32>
    %c0_5 = arith.constant 0 : index
    %c0_6 = arith.constant 0 : index
    %6 = vector.load %arg4[%c0_5, %c0_6] : memref<32x256xf32, #tpu.memory_space<vmem>>, vector<32x256xf32>
    %7 = arith.addf %5, %6 : vector<32x256xf32>
    %c0_7 = arith.constant 0 : index
    %c0_8 = arith.constant 0 : index
    %8 = vector.load %arg5[%c0_7, %c0_8] : memref<32x256xf32, #tpu.memory_space<vmem>>, vector<32x256xf32>
    tpu.vector_store %arg5[%c0_7, %c0_8], %7 {strides = array<i32>} : memref<32x256xf32, #tpu.memory_space<vmem>>, vector<32x256xf32>,
    return
  }
  func.func @transform_0(%arg0: i32) -> (i32, i32) {
    %c0_i32 = arith.constant 0 : i32
    %c0_i32_0 = arith.constant 0 : i32
    return %arg0, %c0_i32 : i32, i32
  }
  func.func @transform_1(%arg0: i32) -> (i32, i32) {
    %c0_i32 = arith.constant 0 : i32
    %c0_i32_0 = arith.constant 0 : i32
    %c0_i32_1 = arith.constant 0 : i32
    return %c0_i32, %c0_i32_0 : i32, i32
  }
  func.func @transform_2(%arg0: i32) -> (i32, i32) {
    %c0_i32 = arith.constant 0 : i32
    %c0_i32_0 = arith.constant 0 : i32
    %c0_i32_1 = arith.constant 0 : i32
    return %c0_i32, %c0_i32_0 : i32, i32
  }
  func.func @transform_3(%arg0: i32) -> (i32, i32) {
    %c0_i32 = arith.constant 0 : i32
    %c0_i32_0 = arith.constant 0 : i32
    return %arg0, %c0_i32 : i32, i32
  }
  func.func @transform_4(%arg0: i32) -> (i32, i32) {
    %c0_i32 = arith.constant 0 : i32
    %c0_i32_0 = arith.constant 0 : i32
    return %arg0, %c0_i32 : i32, i32
  }
}

</mosaic_0001>

<llo_original>
// kernel: mhsa_forward.5
$region0: #{mhsa_forward.5}
  #allocation0 [shape = 'u32[]', space=smem, size = 0x4, offset = 0x4, fixed_abs, tag = 'smem constant byte address 0x4 - core index']
  #allocation1 [shape = 'u32[72,128]{1,0:T(1,128)}', space=vmem, size = 0x9000, scoped, tag = 'internal scratch']
  %s0 = inlined_call_operand.vmem [shape: f32[31,256], index: 0, kind: input, shape index: {}]
  %s1 = inlined_call_operand.vmem [shape: f32[256,256], index: 1, kind: input, shape index: {}]
  %s2 = inlined_call_operand.vmem [shape: f32[1,256], index: 2, kind: input, shape index: {}]
  %s3 = inlined_call_operand.vmem [shape: f32[31,256], index: 3, kind: output, shape index: {}]
  %s4 = sld [smem:[#allocation0]]
  $region22: #{mhsa_forward.5} parent=0
    _
  %s6 = ssub.s32 1, %s4
  %s7 = scalar_select 0, %s6, %s4
  // Predicated region
  $region2: #{mhsa_forward.5} parent=0 // pred_check
    _
  $region3: #{mhsa_forward.5} parent=0 // pred_check_branch
    %9 = sbr.rel (0) target = $region5
  $region4: #{mhsa_forward.5} parent=0 // pred_region
    _
  $region5: #{mhsa_forward.5} parent=0 // pred_fallthru
    _
  // Predicated region
  $region6: #{mhsa_forward.5} parent=0 // pred_check
    _
  $region7: #{mhsa_forward.5} parent=0 // pred_check_branch
    %11 = sbr.rel (0) target = $region9
  $region8: #{mhsa_forward.5} parent=0 // pred_region
    _
  $region9: #{mhsa_forward.5} parent=0 // pred_fallthru
    _
  // Predicated region
  $region10: #{mhsa_forward.5} parent=0 // pred_check
    _
  $region11: #{mhsa_forward.5} parent=0 // pred_check_branch
    %13 = sbr.rel (0) target = $region13
  $region12: #{mhsa_forward.5} parent=0 // pred_region
    _
  $region13: #{mhsa_forward.5} parent=0 // pred_fallthru
    _
  %v14 = vld [vmem:[%s0] sm:$0xff]
  %v15 = vld [vmem:[%s0 + $0x8] sm:$0xff]
  %v16 = vld [vmem:[%s0 + $0x10] sm:$0xff]
  %v17 = vld [vmem:[%s0 + $0x18] sm:$0xff]
  %v18 = vld [vmem:[%s0 + $0x20] sm:$0xff]
  %v19 = vld [vmem:[%s0 + $0x28] sm:$0xff]
  %v20 = vld [vmem:[%s0 + $0x30] sm:$0x7f]
  %v21 = vld [vmem:[%s0 + $0x38] sm:$0x7f]
  %v22 = vld [vmem:[%s1] sm:$0xff]
  %v23 = vld [vmem:[%s1 + $0x8] sm:$0xff]
  %v24 = vld [vmem:[%s1 + $0x10] sm:$0xff]
  %v25 = vld [vmem:[%s1 + $0x18] sm:$0xff]
  %v26 = vld [vmem:[%s1 + $0x20] sm:$0xff]
  %v27 = vld [vmem:[%s1 + $0x28] sm:$0xff]
  %v28 = vld [vmem:[%s1 + $0x30] sm:$0xff]
  %v29 = vld [vmem:[%s1 + $0x38] sm:$0xff]
  %v30 = vld [vmem:[%s1 + $0x40] sm:$0xff]
  %v31 = vld [vmem:[%s1 + $0x48] sm:$0xff]
  %v32 = vld [vmem:[%s1 + $0x50] sm:$0xff]
  %v33 = vld [vmem:[%s1 + $0x58] sm:$0xff]
  %v34 = vld [vmem:[%s1 + $0x60] sm:$0xff]
  %v35 = vld [vmem:[%s1 + $0x68] sm:$0xff]
  %v36 = vld [vmem:[%s1 + $0x70] sm:$0xff]
  %v37 = vld [vmem:[%s1 + $0x78] sm:$0xff]
  %v38 = vld [vmem:[%s1 + $0x80] sm:$0xff]
  %v39 = vld [vmem:[%s1 + $0x88] sm:$0xff]
  %v40 = vld [vmem:[%s1 + $0x90] sm:$0xff]
  %v41 = vld [vmem:[%s1 + $0x98] sm:$0xff]
  %v42 = vld [vmem:[%s1 + $0xa0] sm:$0xff]
  %v43 = vld [vmem:[%s1 + $0xa8] sm:$0xff]
  %v44 = vld [vmem:[%s1 + $0xb0] sm:$0xff]
  %v45 = vld [vmem:[%s1 + $0xb8] sm:$0xff]
  %v46 = vld [vmem:[%s1 + $0xc0] sm:$0xff]
  %v47 = vld [vmem:[%s1 + $0xc8] sm:$0xff]
  %v48 = vld [vmem:[%s1 + $0xd0] sm:$0xff]
  %v49 = vld [vmem:[%s1 + $0xd8] sm:$0xff]
  %v50 = vld [vmem:[%s1 + $0xe0] sm:$0xff]
  %v51 = vld [vmem:[%s1 + $0xe8] sm:$0xff]
  %v52 = vld [vmem:[%s1 + $0xf0] sm:$0xff]
  %v53 = vld [vmem:[%s1 + $0xf8] sm:$0xff]
  %v54 = vld [vmem:[%s1 + $0x100] sm:$0xff]
  %v55 = vld [vmem:[%s1 + $0x108] sm:$0xff]
  %v56 = vld [vmem:[%s1 + $0x110] sm:$0xff]
  %v57 = vld [vmem:[%s1 + $0x118] sm:$0xff]
  %v58 = vld [vmem:[%s1 + $0x120] sm:$0xff]
  %v59 = vld [vmem:[%s1 + $0x128] sm:$0xff]
  %v60 = vld [vmem:[%s1 + $0x130] sm:$0xff]
  %v61 = vld [vmem:[%s1 + $0x138] sm:$0xff]
  %v62 = vld [vmem:[%s1 + $0x140] sm:$0xff]
  %v63 = vld [vmem:[%s1 + $0x148] sm:$0xff]
  %v64 = vld [vmem:[%s1 + $0x150] sm:$0xff]
  %v65 = vld [vmem:[%s1 + $0x158] sm:$0xff]
  %v66 = vld [vmem:[%s1 + $0x160] sm:$0xff]
  %v67 = vld [vmem:[%s1 + $0x168] sm:$0xff]
  %v68 = vld [vmem:[%s1 + $0x170] sm:$0xff]
  %v69 = vld [vmem:[%s1 + $0x178] sm:$0xff]
  %v70 = vld [vmem:[%s1 + $0x180] sm:$0xff]
  %v71 = vld [vmem:[%s1 + $0x188] sm:$0xff]
  %v72 = vld [vmem:[%s1 + $0x190] sm:$0xff]
  %v73 = vld [vmem:[%s1 + $0x198] sm:$0xff]
  %v74 = vld [vmem:[%s1 + $0x1a0] sm:$0xff]
  %v75 = vld [vmem:[%s1 + $0x1a8] sm:$0xff]
  %v76 = vld [vmem:[%s1 + $0x1b0] sm:$0xff]
  %v77 = vld [vmem:[%s1 + $0x1b8] sm:$0xff]
  %v78 = vld [vmem:[%s1 + $0x1c0] sm:$0xff]
  %v79 = vld [vmem:[%s1 + $0x1c8] sm:$0xff]
  %v80 = vld [vmem:[%s1 + $0x1d0] sm:$0xff]
  %v81 = vld [vmem:[%s1 + $0x1d8] sm:$0xff]
  %v82 = vld [vmem:[%s1 + $0x1e0] sm:$0xff]
  %v83 = vld [vmem:[%s1 + $0x1e8] sm:$0xff]
  %v84 = vld [vmem:[%s1 + $0x1f0] sm:$0xff]
  %v85 = vld [vmem:[%s1 + $0x1f8] sm:$0xff]
  %v86 = vld [vmem:[%s2] sm:$0x3]
  %v88 = vperm.slane %v86, 0
  %v89 = vperm.slane %v86, 1
  %92 = vmatpush.msra.mxu0 %v52
  %93 = vmatpush.msra.mxu0 %v50
  %94 = vmatpush.msra.mxu0 %v48
  %95 = vmatpush.msra.mxu0 %v46
  %96 = vmatpush.msra.mxu0 %v44
  %97 = vmatpush.msra.mxu0 %v42
  %98 = vmatpush.msra.mxu0 %v40
  %99 = vmatpush.msra.mxu0 %v38
  %100 = vmatpush.msra.mxu0 %v36
  %101 = vmatpush.msra.mxu0 %v34
  %102 = vmatpush.msra.mxu0 %v32
  %103 = vmatpush.msra.mxu0 %v30
  %104 = vmatpush.msra.mxu0 %v28
  %105 = vmatpush.msra.mxu0 %v26
  %106 = vmatpush.msra.mxu0 %v24
  %107 = vmatpush.msra.mxu0 %v22
  %108 = vmatmul.f32.gmra.mxu0 %v14
  %v109 = vpop.f32.mrf.mxu0
  %v110 = vadd.f32 %v88, %v109
  %111 = vmatmul.f32.gmra.mxu0 %v16
  %v112 = vpop.f32.mrf.mxu0
  %v113 = vadd.f32 %v88, %v112
  %114 = vmatmul.f32.gmra.mxu0 %v18
  %v115 = vpop.f32.mrf.mxu0
  %v116 = vadd.f32 %v88, %v115
  %117 = vmatmul.f32.gmra.mxu0 %v20
  %v118 = vpop.f32.mrf.mxu0
  %v119 = vadd.f32 %v88, %v118
  %120 = vdwg.mxu0
  %121 = vmatpush.msra.mxu0 %v84
  %122 = vmatpush.msra.mxu0 %v82
  %123 = vmatpush.msra.mxu0 %v80
  %124 = vmatpush.msra.mxu0 %v78
  %125 = vmatpush.msra.mxu0 %v76
  %126 = vmatpush.msra.mxu0 %v74
  %127 = vmatpush.msra.mxu0 %v72
  %128 = vmatpush.msra.mxu0 %v70
  %129 = vmatpush.msra.mxu0 %v68
  %130 = vmatpush.msra.mxu0 %v66
  %131 = vmatpush.msra.mxu0 %v64
  %132 = vmatpush.msra.mxu0 %v62
  %133 = vmatpush.msra.mxu0 %v60
  %134 = vmatpush.msra.mxu0 %v58
  %135 = vmatpush.msra.mxu0 %v56
  %136 = vmatpush.msra.mxu0 %v54
  %137 = vmatmul.f32.gmra.mxu0 %v15
  %v138 = vpop.f32.mrf.mxu0
  %v139 = vadd.f32 %v110, %v138
  %140 = vmatmul.f32.gmra.mxu0 %v17
  %v141 = vpop.f32.mrf.mxu0
  %v142 = vadd.f32 %v113, %v141
  %143 = vmatmul.f32.gmra.mxu0 %v19
  %v144 = vpop.f32.mrf.mxu0
  %v145 = vadd.f32 %v116, %v144
  %146 = vmatmul.f32.gmra.mxu0 %v21
  %v147 = vpop.f32.mrf.mxu0
  %v148 = vadd.f32 %v119, %v147
  %149 = vdwg.mxu0
  %150 = vmatpush.msra.mxu0 %v53
  %151 = vmatpush.msra.mxu0 %v51
  %152 = vmatpush.msra.mxu0 %v49
  %153 = vmatpush.msra.mxu0 %v47
  %154 = vmatpush.msra.mxu0 %v45
  %155 = vmatpush.msra.mxu0 %v43
  %156 = vmatpush.msra.mxu0 %v41
  %157 = vmatpush.msra.mxu0 %v39
  %158 = vmatpush.msra.mxu0 %v37
  %159 = vmatpush.msra.mxu0 %v35
  %160 = vmatpush.msra.mxu0 %v33
  %161 = vmatpush.msra.mxu0 %v31
  %162 = vmatpush.msra.mxu0 %v29
  %163 = vmatpush.msra.mxu0 %v27
  %164 = vmatpush.msra.mxu0 %v25
  %165 = vmatpush.msra.mxu0 %v23
  %166 = vmatmul.f32.gmra.mxu0 %v14
  %v167 = vpop.f32.mrf.mxu0
  %v168 = vadd.f32 %v89, %v167
  %169 = vmatmul.f32.gmra.mxu0 %v16
  %v170 = vpop.f32.mrf.mxu0
  %v171 = vadd.f32 %v89, %v170
  %172 = vmatmul.f32.gmra.mxu0 %v18
  %v173 = vpop.f32.mrf.mxu0
  %v174 = vadd.f32 %v89, %v173
  %175 = vmatmul.f32.gmra.mxu0 %v20
  %v176 = vpop.f32.mrf.mxu0
  %v177 = vadd.f32 %v89, %v176
  %178 = vdwg.mxu0
  %179 = vmatpush.msra.mxu0 %v85
  %180 = vmatpush.msra.mxu0 %v83
  %181 = vmatpush.msra.mxu0 %v81
  %182 = vmatpush.msra.mxu0 %v79
  %183 = vmatpush.msra.mxu0 %v77
  %184 = vmatpush.msra.mxu0 %v75
  %185 = vmatpush.msra.mxu0 %v73
  %186 = vmatpush.msra.mxu0 %v71
  %187 = vmatpush.msra.mxu0 %v69
  %188 = vmatpush.msra.mxu0 %v67
  %189 = vmatpush.msra.mxu0 %v65
  %190 = vmatpush.msra.mxu0 %v63
  %191 = vmatpush.msra.mxu0 %v61
  %192 = vmatpush.msra.mxu0 %v59
  %193 = vmatpush.msra.mxu0 %v57
  %194 = vmatpush.msra.mxu0 %v55
  %195 = vmatmul.f32.gmra.mxu0 %v15
  %v196 = vpop.f32.mrf.mxu0
  %v197 = vadd.f32 %v168, %v196
  %198 = vmatmul.f32.gmra.mxu0 %v17
  %v199 = vpop.f32.mrf.mxu0
  %v200 = vadd.f32 %v171, %v199
  %201 = vmatmul.f32.gmra.mxu0 %v19
  %v202 = vpop.f32.mrf.mxu0
  %v203 = vadd.f32 %v174, %v202
  %204 = vmatmul.f32.gmra.mxu0 %v21
  %v205 = vpop.f32.mrf.mxu0
  %v206 = vadd.f32 %v177, %v205
  %207 = vdwg.mxu0
  %208 = vst [vmem:[%s3] sm:$0xff] %v139
  %209 = vst [vmem:[%s3 + $0x8] sm:$0xff] %v197
  %210 = vst [vmem:[%s3 + $0x10] sm:$0xff] %v142
  %211 = vst [vmem:[%s3 + $0x18] sm:$0xff] %v200
  %212 = vst [vmem:[%s3 + $0x20] sm:$0xff] %v145
  %213 = vst [vmem:[%s3 + $0x28] sm:$0xff] %v203
  %214 = vst [vmem:[%s3 + $0x30] sm:$0x7f] %v148
  %215 = vst [vmem:[%s3 + $0x38] sm:$0x7f] %v206
  // Predicated region
  $region14: #{mhsa_forward.5} parent=0 // pred_check
    _
  $region15: #{mhsa_forward.5} parent=0 // pred_check_branch
    %217 = sbr.rel (0) target = $region17
  $region16: #{mhsa_forward.5} parent=0 // pred_region
    _
  $region17: #{mhsa_forward.5} parent=0 // pred_fallthru
    _
  // Predicated region
  $region18: #{mhsa_forward.5} parent=0 // pred_check
    _
  $region19: #{mhsa_forward.5} parent=0 // pred_check_branch
    %219 = sbr.rel (0) target = $region21
  $region20: #{mhsa_forward.5} parent=0 // pred_region
    _
  $region21: #{mhsa_forward.5} parent=0 // pred_fallthru
    _

// kernel: mhsa_forward.4
$region0: #{mhsa_forward.4}
  #allocation0 [shape = 'u32[]', space=smem, size = 0x4, offset = 0x4, fixed_abs, tag = 'smem constant byte address 0x4 - core index']
  #allocation1 [shape = 'u32[72,128]{1,0:T(1,128)}', space=vmem, size = 0x9000, scoped, tag = 'internal scratch']
  %s0 = inlined_call_operand.hbm [shape: f32[32,256], index: 0, kind: input, shape index: {}]
  %s1 = inlined_call_operand.vmem [shape: f32[1,256], index: 1, kind: input, shape index: {}]
  %s2 = inlined_call_operand.vmem [shape: f32[1,256], index: 2, kind: input, shape index: {}]
  %s3 = inlined_call_operand.hbm [shape: f32[256,768], index: 3, kind: input, shape index: {}]
  %s4 = inlined_call_operand.vmem [shape: f32[1,768], index: 4, kind: input, shape index: {}]
  %s5 = inlined_call_operand.vmem [shape: f32[32,256], index: 5, kind: output, shape index: {0}]
  %s6 = inlined_call_operand.vmem [shape: f32[32,256], index: 6, kind: output, shape index: {1}]
  %s7 = inlined_call_operand.vmem [shape: f32[32,256], index: 7, kind: output, shape index: {2}]
  %8 = xla_tuple %s5, %s6, %s7
  %s9 = sld [smem:[#allocation0]]
  $region54: #{mhsa_forward.4} parent=0
    _
  %s11 = ssub.s32 1, %s9
  %s12 = scalar_select 0, %s11, %s9
  $region1: #{mhsa_forward.4} parent=0
    #allocation2 [shape = 'u8[32768]{0}', space=vmem, size = 0x8000, scoped, tag = 'input window, operand 0, single buffered']
    #allocation3 [shape = 's32[1]{0}', space=sflag, size = 0x4, scoped, tag = 'scoped memory for mhsa_forward.4']
    #allocation4 [shape = 'u8[786432]{0}', space=vmem, size = 0xc0000, scoped, tag = 'input window, operand 3, single buffered']
    #allocation5 [shape = 's32[1]{0}', space=sflag, size = 0x4, scoped, tag = 'scoped memory for mhsa_forward.4']
    %13 = vsyncpa [#allocation3], 0
    %14 = vsyncpa [#allocation5], 0
    // Predicated region
    $region2: #{mhsa_forward.4} parent=1 // pred_check
      _
    $region3: #{mhsa_forward.4} parent=1 // pred_check_branch
      %16 = sbr.rel (0) target = $region5
    $region4: #{mhsa_forward.4} parent=1 // pred_region
      %18 = vsyncadd [#allocation3], 0
      %s19 = sshll.u32 %s0, 4
      %s20 = int_to_ptr.hbm [resolvable:$true] %s19
      %s21 = sshll.u32 [#allocation2], 4
      %s22 = int_to_ptr.vmem [resolvable:$true] %s21
      %27 = dma.hbm_to_vmem [thread:$0]  %s20, 1024, %s22, [#allocation3], 256, 256, 16
    $region5: #{mhsa_forward.4} parent=1 // pred_fallthru
      _
    // Predicated region
    $region6: #{mhsa_forward.4} parent=1 // pred_check
      _
    $region7: #{mhsa_forward.4} parent=1 // pred_check_branch
      %29 = sbr.rel (0) target = $region9
    $region8: #{mhsa_forward.4} parent=1 // pred_region
      _
    $region9: #{mhsa_forward.4} parent=1 // pred_fallthru
      _
    // Predicated region
    $region10: #{mhsa_forward.4} parent=1 // pred_check
      _
    $region11: #{mhsa_forward.4} parent=1 // pred_check_branch
      %31 = sbr.rel (0) target = $region13
    $region12: #{mhsa_forward.4} parent=1 // pred_region
      _
    $region13: #{mhsa_forward.4} parent=1 // pred_fallthru
      _
    // Predicated region
    $region14: #{mhsa_forward.4} parent=1 // pred_check
      _
    $region15: #{mhsa_forward.4} parent=1 // pred_check_branch
      %33 = sbr.rel (0) target = $region17
    $region16: #{mhsa_forward.4} parent=1 // pred_region
      %35 = vsyncadd [#allocation5], 0
      %s36 = sshll.u32 %s3, 4
      %s37 = int_to_ptr.hbm [resolvable:$true] %s36
      %s38 = sshll.u32 [#allocation4], 4
      %s39 = int_to_ptr.vmem [resolvable:$true] %s38
      %44 = dma.hbm_to_vmem [thread:$0]  %s37, 24576, %s39, [#allocation5], 768, 768, 48
    $region17: #{mhsa_forward.4} parent=1 // pred_fallthru
      _
    // Predicated region
    $region18: #{mhsa_forward.4} parent=1 // pred_check
      _
    $region19: #{mhsa_forward.4} parent=1 // pred_check_branch
      %46 = sbr.rel (0) target = $region21
    $region20: #{mhsa_forward.4} parent=1 // pred_region
      _
    $region21: #{mhsa_forward.4} parent=1 // pred_fallthru
      _
    // Predicated region
    $region22: #{mhsa_forward.4} parent=1 // pred_check
      _
    $region23: #{mhsa_forward.4} parent=1 // pred_check_branch
      %48 = sbr.rel (0) target = $region25
    $region24: #{mhsa_forward.4} parent=1 // pred_region
      %50 = dma.done [#allocation3], 1024
    $region25: #{mhsa_forward.4} parent=1 // pred_fallthru
      _
    // Predicated region
    $region26: #{mhsa_forward.4} parent=1 // pred_check
      _
    $region27: #{mhsa_forward.4} parent=1 // pred_check_branch
      %52 = sbr.rel (0) target = $region29
    $region28: #{mhsa_forward.4} parent=1 // pred_region
      %54 = dma.done [#allocation5], 24576
    $region29: #{mhsa_forward.4} parent=1 // pred_fallthru
      _
    %v55 = vld [vmem:[#allocation2] sm:$0xff]
    %v56 = vld [vmem:[#allocation2 + $0x8] sm:$0xff]
    %v57 = vld [vmem:[#allocation2 + $0x10] sm:$0xff]
    %v58 = vld [vmem:[#allocation2 + $0x18] sm:$0xff]
    %v59 = vld [vmem:[#allocation2 + $0x20] sm:$0xff]
    %v60 = vld [vmem:[#allocation2 + $0x28] sm:$0xff]
    %v61 = vld [vmem:[#allocation2 + $0x30] sm:$0xff]
    %v62 = vld [vmem:[#allocation2 + $0x38] sm:$0xff]
    %v63 = vadd.f32 %v55, %v56
    %64 = vadd.xlane.f32.xlu0 %v63
    %v65 = vpop.xlane.xlu0 %64
    %v66 = vadd.f32 %v57, %v58
    %67 = vadd.xlane.f32.xlu0 %v66
    %v68 = vpop.xlane.xlu0 %67
    %v69 = vadd.f32 %v59, %v60
    %70 = vadd.xlane.f32.xlu0 %v69
    %v71 = vpop.xlane.xlu0 %70
    %v72 = vadd.f32 %v61, %v62
    %73 = vadd.xlane.f32.xlu0 %v72
    %v74 = vpop.xlane.xlu0 %73
    %v75 = vrcp.pop 256.0
    %v76 = vmul.f32 256.0, %v75
    %v77 = vsub.f32 1.0, %v76
    %v78 = vmul.f32 %v75, %v77
    %v79 = vadd.f32 %v75, %v78
    %vm80 = vweird.f32 %v75
    %v81 = vsel %vm80, %v75, %v79
    %v82 = vmul.f32 %v65, %v81
    %v83 = vmul.f32 %v68, %v81
    %v84 = vmul.f32 %v71, %v81
    %v85 = vmul.f32 %v74, %v81
    %v86 = vsub.f32 %v55, %v82
    %v87 = vsub.f32 %v56, %v82
    %v88 = vsub.f32 %v57, %v83
    %v89 = vsub.f32 %v58, %v83
    %v90 = vsub.f32 %v59, %v84
    %v91 = vsub.f32 %v60, %v84
    %v92 = vsub.f32 %v61, %v85
    %v93 = vsub.f32 %v62, %v85
    %v94 = vmul.f32 %v86, %v86
    %v95 = vmul.f32 %v87, %v87
    %v96 = vmul.f32 %v88, %v88
    %v97 = vmul.f32 %v89, %v89
    %v98 = vmul.f32 %v90, %v90
    %v99 = vmul.f32 %v91, %v91
    %v100 = vmul.f32 %v92, %v92
    %v101 = vmul.f32 %v93, %v93
    %v102 = vadd.f32 %v94, %v95
    %103 = vadd.xlane.f32.xlu0 %v102
    %v104 = vpop.xlane.xlu0 %103
    %v105 = vadd.f32 %v96, %v97
    %106 = vadd.xlane.f32.xlu0 %v105
    %v107 = vpop.xlane.xlu0 %106
    %v108 = vadd.f32 %v98, %v99
    %109 = vadd.xlane.f32.xlu0 %v108
    %v110 = vpop.xlane.xlu0 %109
    %v111 = vadd.f32 %v100, %v101
    %112 = vadd.xlane.f32.xlu0 %v111
    %v113 = vpop.xlane.xlu0 %112
    %v114 = vmul.f32 %v104, %v81
    %v115 = vmul.f32 %v107, %v81
    %v116 = vmul.f32 %v110, %v81
    %v117 = vmul.f32 %v113, %v81
    %v118 = vadd.f32 %v114, 1e-05
    %v119 = vadd.f32 %v115, 1e-05
    %v120 = vadd.f32 %v116, 1e-05
    %v121 = vadd.f32 %v117, 1e-05
    %v122 = vrsqrt.pop %v118
    %v123 = vmul.f32 %v122, %v118
    %v124 = vmul.f32 %v123, %v122
    %v125 = vmul.f32 0.5, %v124
    %v126 = vsub.f32 1.5, %v125
    %v127 = vmul.f32 %v122, %v126
    %vm128 = vweird.f32 %v118
    %vm129 = vweird.f32 %v122
    %vm130 = vmor %vm128, %vm129
    %v131 = vsel %vm130, %v122, %v127
    %v132 = vrsqrt.pop %v119
    %v133 = vmul.f32 %v132, %v119
    %v134 = vmul.f32 %v133, %v132
    %v135 = vmul.f32 0.5, %v134
    %v136 = vsub.f32 1.5, %v135
    %v137 = vmul.f32 %v132, %v136
    %vm138 = vweird.f32 %v119
    %vm139 = vweird.f32 %v132
    %vm140 = vmor %vm138, %vm139
    %v141 = vsel %vm140, %v132, %v137
    %v142 = vrsqrt.pop %v120
    %v143 = vmul.f32 %v142, %v120
    %v144 = vmul.f32 %v143, %v142
    %v145 = vmul.f32 0.5, %v144
    %v146 = vsub.f32 1.5, %v145
    %v147 = vmul.f32 %v142, %v146
    %vm148 = vweird.f32 %v120
    %vm149 = vweird.f32 %v142
    %vm150 = vmor %vm148, %vm149
    %v151 = vsel %vm150, %v142, %v147
    %v152 = vrsqrt.pop %v121
    %v153 = vmul.f32 %v152, %v121
    %v154 = vmul.f32 %v153, %v152
    %v155 = vmul.f32 0.5, %v154
    %v156 = vsub.f32 1.5, %v155
    %v157 = vmul.f32 %v152, %v156
    %vm158 = vweird.f32 %v121
    %vm159 = vweird.f32 %v152
    %vm160 = vmor %vm158, %vm159
    %v161 = vsel %vm160, %v152, %v157
    %v162 = vmul.f32 %v86, %v131
    %v163 = vmul.f32 %v87, %v131
    %v164 = vmul.f32 %v88, %v141
    %v165 = vmul.f32 %v89, %v141
    %v166 = vmul.f32 %v90, %v151
    %v167 = vmul.f32 %v91, %v151
    %v168 = vmul.f32 %v92, %v161
    %v169 = vmul.f32 %v93, %v161
    %v170 = vld [vmem:[%s1] sm:$0x3]
    %v172 = vperm.slane %v170, 0
    %v173 = vperm.slane %v170, 1
    %v176 = vmul.f32 %v162, %v172
    %v177 = vmul.f32 %v163, %v173
    %v178 = vmul.f32 %v164, %v172
    %v179 = vmul.f32 %v165, %v173
    %v180 = vmul.f32 %v166, %v172
    %v181 = vmul.f32 %v167, %v173
    %v182 = vmul.f32 %v168, %v172
    %v183 = vmul.f32 %v169, %v173
    %v184 = vld [vmem:[%s2] sm:$0x3]
    %v186 = vperm.slane %v184, 0
    %v187 = vperm.slane %v184, 1
    %v190 = vadd.f32 %v176, %v186
    %v191 = vadd.f32 %v177, %v187
    %v192 = vadd.f32 %v178, %v186
    %v193 = vadd.f32 %v179, %v187
    %v194 = vadd.f32 %v180, %v186
    %v195 = vadd.f32 %v181, %v187
    %v196 = vadd.f32 %v182, %v186
    %v197 = vadd.f32 %v183, %v187
    %v198 = vld [vmem:[#allocation4] sm:$0xff]
    %v199 = vld [vmem:[#allocation4 + $0x8] sm:$0xff]
    %v200 = vld [vmem:[#allocation4 + $0x10] sm:$0xff]
    %v201 = vld [vmem:[#allocation4 + $0x18] sm:$0xff]
    %v202 = vld [vmem:[#allocation4 + $0x20] sm:$0xff]
    %v203 = vld [vmem:[#allocation4 + $0x28] sm:$0xff]
    %v204 = vld [vmem:[#allocation4 + $0x30] sm:$0xff]
    %v205 = vld [vmem:[#allocation4 + $0x38] sm:$0xff]
    %v206 = vld [vmem:[#allocation4 + $0x40] sm:$0xff]
    %v207 = vld [vmem:[#allocation4 + $0x48] sm:$0xff]
    %v208 = vld [vmem:[#allocation4 + $0x50] sm:$0xff]
    %v209 = vld [vmem:[#allocation4 + $0x58] sm:$0xff]
    %v210 = vld [vmem:[#allocation4 + $0x60] sm:$0xff]
    %v211 = vld [vmem:[#allocation4 + $0x68] sm:$0xff]
    %v212 = vld [vmem:[#allocation4 + $0x70] sm:$0xff]
    %v213 = vld [vmem:[#allocation4 + $0x78] sm:$0xff]
    %v214 = vld [vmem:[#allocation4 + $0x80] sm:$0xff]
    %v215 = vld [vmem:[#allocation4 + $0x88] sm:$0xff]
    %v216 = vld [vmem:[#allocation4 + $0x90] sm:$0xff]
    %v217 = vld [vmem:[#allocation4 + $0x98] sm:$0xff]
    %v218 = vld [vmem:[#allocation4 + $0xa0] sm:$0xff]
    %v219 = vld [vmem:[#allocation4 + $0xa8] sm:$0xff]
    %v220 = vld [vmem:[#allocation4 + $0xb0] sm:$0xff]
    %v221 = vld [vmem:[#allocation4 + $0xb8] sm:$0xff]
    %v222 = vld [vmem:[#allocation4 + $0xc0] sm:$0xff]
    %v223 = vld [vmem:[#allocation4 + $0xc8] sm:$0xff]
    %v224 = vld [vmem:[#allocation4 + $0xd0] sm:$0xff]
    %v225 = vld [vmem:[#allocation4 + $0xd8] sm:$0xff]
    %v226 = vld [vmem:[#allocation4 + $0xe0] sm:$0xff]
    %v227 = vld [vmem:[#allocation4 + $0xe8] sm:$0xff]
    %v228 = vld [vmem:[#allocation4 + $0xf0] sm:$0xff]
    %v229 = vld [vmem:[#allocation4 + $0xf8] sm:$0xff]
    %v230 = vld [vmem:[#allocation4 + $0x100] sm:$0xff]
    %v231 = vld [vmem:[#allocation4 + $0x108] sm:$0xff]
    %v232 = vld [vmem:[#allocation4 + $0x110] sm:$0xff]
    %v233 = vld [vmem:[#allocation4 + $0x118] sm:$0xff]
    %v234 = vld [vmem:[#allocation4 + $0x120] sm:$0xff]
    %v235 = vld [vmem:[#allocation4 + $0x128] sm:$0xff]
    %v236 = vld [vmem:[#allocation4 + $0x130] sm:$0xff]
    %v237 = vld [vmem:[#allocation4 + $0x138] sm:$0xff]
    %v238 = vld [vmem:[#allocation4 + $0x140] sm:$0xff]
    %v239 = vld [vmem:[#allocation4 + $0x148] sm:$0xff]
    %v240 = vld [vmem:[#allocation4 + $0x150] sm:$0xff]
    %v241 = vld [vmem:[#allocation4 + $0x158] sm:$0xff]
    %v242 = vld [vmem:[#allocation4 + $0x160] sm:$0xff]
    %v243 = vld [vmem:[#allocation4 + $0x168] sm:$0xff]
    %v244 = vld [vmem:[#allocation4 + $0x170] sm:$0xff]
    %v245 = vld [vmem:[#allocation4 + $0x178] sm:$0xff]
    %v246 = vld [vmem:[#allocation4 + $0x180] sm:$0xff]
    %v247 = vld [vmem:[#allocation4 + $0x188] sm:$0xff]
    %v248 = vld [vmem:[#allocation4 + $0x190] sm:$0xff]
    %v249 = vld [vmem:[#allocation4 + $0x198] sm:$0xff]
    %v250 = vld [vmem:[#allocation4 + $0x1a0] sm:$0xff]
    %v251 = vld [vmem:[#allocation4 + $0x1a8] sm:$0xff]
    %v252 = vld [vmem:[#allocation4 + $0x1b0] sm:$0xff]
    %v253 = vld [vmem:[#allocation4 + $0x1b8] sm:$0xff]
    %v254 = vld [vmem:[#allocation4 + $0x1c0] sm:$0xff]
    %v255 = vld [vmem:[#allocation4 + $0x1c8] sm:$0xff]
    %v256 = vld [vmem:[#allocation4 + $0x1d0] sm:$0xff]
    %v257 = vld [vmem:[#allocation4 + $0x1d8] sm:$0xff]
    %v258 = vld [vmem:[#allocation4 + $0x1e0] sm:$0xff]
    %v259 = vld [vmem:[#allocation4 + $0x1e8] sm:$0xff]
    %v260 = vld [vmem:[#allocation4 + $0x1f0] sm:$0xff]
    %v261 = vld [vmem:[#allocation4 + $0x1f8] sm:$0xff]
    %v262 = vld [vmem:[#allocation4 + $0x200] sm:$0xff]
    %v263 = vld [vmem:[#allocation4 + $0x208] sm:$0xff]
    %v264 = vld [vmem:[#allocation4 + $0x210] sm:$0xff]
    %v265 = vld [vmem:[#allocation4 + $0x218] sm:$0xff]
    %v266 = vld [vmem:[#allocation4 + $0x220] sm:$0xff]
    %v267 = vld [vmem:[#allocation4 + $0x228] sm:$0xff]
    %v268 = vld [vmem:[#allocation4 + $0x230] sm:$0xff]
    %v269 = vld [vmem:[#allocation4 + $0x238] sm:$0xff]
    %v270 = vld [vmem:[#allocation4 + $0x240] sm:$0xff]
    %v271 = vld [vmem:[#allocation4 + $0x248] sm:$0xff]
    %v272 = vld [vmem:[#allocation4 + $0x250] sm:$0xff]
    %v273 = vld [vmem:[#allocation4 + $0x258] sm:$0xff]
    %v274 = vld [vmem:[#allocation4 + $0x260] sm:$0xff]
    %v275 = vld [vmem:[#allocation4 + $0x268] sm:$0xff]
    %v276 = vld [vmem:[#allocation4 + $0x270] sm:$0xff]
    %v277 = vld [vmem:[#allocation4 + $0x278] sm:$0xff]
    %v278 = vld [vmem:[#allocation4 + $0x280] sm:$0xff]
    %v279 = vld [vmem:[#allocation4 + $0x288] sm:$0xff]
    %v280 = vld [vmem:[#allocation4 + $0x290] sm:$0xff]
    %v281 = vld [vmem:[#allocation4 + $0x298] sm:$0xff]
    %v282 = vld [vmem:[#allocation4 + $0x2a0] sm:$0xff]
    %v283 = vld [vmem:[#allocation4 + $0x2a8] sm:$0xff]
    %v284 = vld [vmem:[#allocation4 + $0x2b0] sm:$0xff]
    %v285 = vld [vmem:[#allocation4 + $0x2b8] sm:$0xff]
    %v286 = vld [vmem:[#allocation4 + $0x2c0] sm:$0xff]
    %v287 = vld [vmem:[#allocation4 + $0x2c8] sm:$0xff]
    %v288 = vld [vmem:[#allocation4 + $0x2d0] sm:$0xff]
    %v289 = vld [vmem:[#allocation4 + $0x2d8] sm:$0xff]
    %v290 = vld [vmem:[#allocation4 + $0x2e0] sm:$0xff]
    %v291 = vld [vmem:[#allocation4 + $0x2e8] sm:$0xff]
    %v292 = vld [vmem:[#allocation4 + $0x2f0] sm:$0xff]
    %v293 = vld [vmem:[#allocation4 + $0x2f8] sm:$0xff]
    %v294 = vld [vmem:[#allocation4 + $0x300] sm:$0xff]
    %v295 = vld [vmem:[#allocation4 + $0x308] sm:$0xff]
    %v296 = vld [vmem:[#allocation4 + $0x310] sm:$0xff]
    %v297 = vld [vmem:[#allocation4 + $0x318] sm:$0xff]
    %v298 = vld [vmem:[#allocation4 + $0x320] sm:$0xff]
    %v299 = vld [vmem:[#allocation4 + $0x328] sm:$0xff]
    %v300 = vld [vmem:[#allocation4 + $0x330] sm:$0xff]
    %v301 = vld [vmem:[#allocation4 + $0x338] sm:$0xff]
    %v302 = vld [vmem:[#allocation4 + $0x340] sm:$0xff]
    %v303 = vld [vmem:[#allocation4 + $0x348] sm:$0xff]
    %v304 = vld [vmem:[#allocation4 + $0x350] sm:$0xff]
    %v305 = vld [vmem:[#allocation4 + $0x358] sm:$0xff]
    %v306 = vld [vmem:[#allocation4 + $0x360] sm:$0xff]
    %v307 = vld [vmem:[#allocation4 + $0x368] sm:$0xff]
    %v308 = vld [vmem:[#allocation4 + $0x370] sm:$0xff]
    %v309 = vld [vmem:[#allocation4 + $0x378] sm:$0xff]
    %v310 = vld [vmem:[#allocation4 + $0x380] sm:$0xff]
    %v311 = vld [vmem:[#allocation4 + $0x388] sm:$0xff]
    %v312 = vld [vmem:[#allocation4 + $0x390] sm:$0xff]
    %v313 = vld [vmem:[#allocation4 + $0x398] sm:$0xff]
    %v314 = vld [vmem:[#allocation4 + $0x3a0] sm:$0xff]
    %v315 = vld [vmem:[#allocation4 + $0x3a8] sm:$0xff]
    %v316 = vld [vmem:[#allocation4 + $0x3b0] sm:$0xff]
    %v317 = vld [vmem:[#allocation4 + $0x3b8] sm:$0xff]
    %v318 = vld [vmem:[#allocation4 + $0x3c0] sm:$0xff]
    %v319 = vld [vmem:[#allocation4 + $0x3c8] sm:$0xff]
    %v320 = vld [vmem:[#allocation4 + $0x3d0] sm:$0xff]
    %v321 = vld [vmem:[#allocation4 + $0x3d8] sm:$0xff]
    %v322 = vld [vmem:[#allocation4 + $0x3e0] sm:$0xff]
    %v323 = vld [vmem:[#allocation4 + $0x3e8] sm:$0xff]
    %v324 = vld [vmem:[#allocation4 + $0x3f0] sm:$0xff]
    %v325 = vld [vmem:[#allocation4 + $0x3f8] sm:$0xff]
    %v326 = vld [vmem:[#allocation4 + $0x400] sm:$0xff]
    %v327 = vld [vmem:[#allocation4 + $0x408] sm:$0xff]
    %v328 = vld [vmem:[#allocation4 + $0x410] sm:$0xff]
    %v329 = vld [vmem:[#allocation4 + $0x418] sm:$0xff]
    %v330 = vld [vmem:[#allocation4 + $0x420] sm:$0xff]
    %v331 = vld [vmem:[#allocation4 + $0x428] sm:$0xff]
    %v332 = vld [vmem:[#allocation4 + $0x430] sm:$0xff]
    %v333 = vld [vmem:[#allocation4 + $0x438] sm:$0xff]
    %v334 = vld [vmem:[#allocation4 + $0x440] sm:$0xff]
    %v335 = vld [vmem:[#allocation4 + $0x448] sm:$0xff]
    %v336 = vld [vmem:[#allocation4 + $0x450] sm:$0xff]
    %v337 = vld [vmem:[#allocation4 + $0x458] sm:$0xff]
    %v338 = vld [vmem:[#allocation4 + $0x460] sm:$0xff]
    %v339 = vld [vmem:[#allocation4 + $0x468] sm:$0xff]
    %v340 = vld [vmem:[#allocation4 + $0x470] sm:$0xff]
    %v341 = vld [vmem:[#allocation4 + $0x478] sm:$0xff]
    %v342 = vld [vmem:[#allocation4 + $0x480] sm:$0xff]
    %v343 = vld [vmem:[#allocation4 + $0x488] sm:$0xff]
    %v344 = vld [vmem:[#allocation4 + $0x490] sm:$0xff]
    %v345 = vld [vmem:[#allocation4 + $0x498] sm:$0xff]
    %v346 = vld [vmem:[#allocation4 + $0x4a0] sm:$0xff]
    %v347 = vld [vmem:[#allocation4 + $0x4a8] sm:$0xff]
    %v348 = vld [vmem:[#allocation4 + $0x4b0] sm:$0xff]
    %v349 = vld [vmem:[#allocation4 + $0x4b8] sm:$0xff]
    %v350 = vld [vmem:[#allocation4 + $0x4c0] sm:$0xff]
    %v351 = vld [vmem:[#allocation4 + $0x4c8] sm:$0xff]
    %v352 = vld [vmem:[#allocation4 + $0x4d0] sm:$0xff]
    %v353 = vld [vmem:[#allocation4 + $0x4d8] sm:$0xff]
    %v354 = vld [vmem:[#allocation4 + $0x4e0] sm:$0xff]
    %v355 = vld [vmem:[#allocation4 + $0x4e8] sm:$0xff]
    %v356 = vld [vmem:[#allocation4 + $0x4f0] sm:$0xff]
    %v357 = vld [vmem:[#allocation4 + $0x4f8] sm:$0xff]
    %v358 = vld [vmem:[#allocation4 + $0x500] sm:$0xff]
    %v359 = vld [vmem:[#allocation4 + $0x508] sm:$0xff]
    %v360 = vld [vmem:[#allocation4 + $0x510] sm:$0xff]
    %v361 = vld [vmem:[#allocation4 + $0x518] sm:$0xff]
    %v362 = vld [vmem:[#allocation4 + $0x520] sm:$0xff]
    %v363 = vld [vmem:[#allocation4 + $0x528] sm:$0xff]
    %v364 = vld [vmem:[#allocation4 + $0x530] sm:$0xff]
    %v365 = vld [vmem:[#allocation4 + $0x538] sm:$0xff]
    %v366 = vld [vmem:[#allocation4 + $0x540] sm:$0xff]
    %v367 = vld [vmem:[#allocation4 + $0x548] sm:$0xff]
    %v368 = vld [vmem:[#allocation4 + $0x550] sm:$0xff]
    %v369 = vld [vmem:[#allocation4 + $0x558] sm:$0xff]
    %v370 = vld [vmem:[#allocation4 + $0x560] sm:$0xff]
    %v371 = vld [vmem:[#allocation4 + $0x568] sm:$0xff]
    %v372 = vld [vmem:[#allocation4 + $0x570] sm:$0xff]
    %v373 = vld [vmem:[#allocation4 + $0x578] sm:$0xff]
    %v374 = vld [vmem:[#allocation4 + $0x580] sm:$0xff]
    %v375 = vld [vmem:[#allocation4 + $0x588] sm:$0xff]
    %v376 = vld [vmem:[#allocation4 + $0x590] sm:$0xff]
    %v377 = vld [vmem:[#allocation4 + $0x598] sm:$0xff]
    %v378 = vld [vmem:[#allocation4 + $0x5a0] sm:$0xff]
    %v379 = vld [vmem:[#allocation4 + $0x5a8] sm:$0xff]
    %v380 = vld [vmem:[#allocation4 + $0x5b0] sm:$0xff]
    %v381 = vld [vmem:[#allocation4 + $0x5b8] sm:$0xff]
    %v382 = vld [vmem:[#allocation4 + $0x5c0] sm:$0xff]
    %v383 = vld [vmem:[#allocation4 + $0x5c8] sm:$0xff]
    %v384 = vld [vmem:[#allocation4 + $0x5d0] sm:$0xff]
    %v385 = vld [vmem:[#allocation4 + $0x5d8] sm:$0xff]
    %v386 = vld [vmem:[#allocation4 + $0x5e0] sm:$0xff]
    %v387 = vld [vmem:[#allocation4 + $0x5e8] sm:$0xff]
    %v388 = vld [vmem:[#allocation4 + $0x5f0] sm:$0xff]
    %v389 = vld [vmem:[#allocation4 + $0x5f8] sm:$0xff]
    %v390 = vld [vmem:[%s4] sm:$0x3f]
    %v392 = vperm.slane %v390, 0
    %v393 = vperm.slane %v390, 1
    %v394 = vperm.slane %v390, 2
    %v395 = vperm.slane %v390, 3
    %v396 = vperm.slane %v390, 4
    %v397 = vperm.slane %v390, 5
    %404 = vmatpush.msra.mxu0 %v288
    %405 = vmatpush.msra.mxu0 %v282
    %406 = vmatpush.msra.mxu0 %v276
    %407 = vmatpush.msra.mxu0 %v270
    %408 = vmatpush.msra.mxu0 %v264
    %409 = vmatpush.msra.mxu0 %v258
    %410 = vmatpush.msra.mxu0 %v252
    %411 = vmatpush.msra.mxu0 %v246
    %412 = vmatpush.msra.mxu0 %v240
    %413 = vmatpush.msra.mxu0 %v234
    %414 = vmatpush.msra.mxu0 %v228
    %415 = vmatpush.msra.mxu0 %v222
    %416 = vmatpush.msra.mxu0 %v216
    %417 = vmatpush.msra.mxu0 %v210
    %418 = vmatpush.msra.mxu0 %v204
    %419 = vmatpush.msra.mxu0 %v198
    %420 = vmatmul.f32.gmra.mxu0 %v190
    %v421 = vpop.f32.mrf.mxu0
    %v422 = vadd.f32 %v392, %v421
    %423 = vmatmul.f32.gmra.mxu0 %v192
    %v424 = vpop.f32.mrf.mxu0
    %v425 = vadd.f32 %v392, %v424
    %426 = vmatmul.f32.gmra.mxu0 %v194
    %v427 = vpop.f32.mrf.mxu0
    %v428 = vadd.f32 %v392, %v427
    %429 = vmatmul.f32.gmra.mxu0 %v196
    %v430 = vpop.f32.mrf.mxu0
    %v431 = vadd.f32 %v392, %v430
    %432 = vdwg.mxu0
    %433 = vmatpush.msra.mxu0 %v384
    %434 = vmatpush.msra.mxu0 %v378
    %435 = vmatpush.msra.mxu0 %v372
    %436 = vmatpush.msra.mxu0 %v366
    %437 = vmatpush.msra.mxu0 %v360
    %438 = vmatpush.msra.mxu0 %v354
    %439 = vmatpush.msra.mxu0 %v348
    %440 = vmatpush.msra.mxu0 %v342
    %441 = vmatpush.msra.mxu0 %v336
    %442 = vmatpush.msra.mxu0 %v330
    %443 = vmatpush.msra.mxu0 %v324
    %444 = vmatpush.msra.mxu0 %v318
    %445 = vmatpush.msra.mxu0 %v312
    %446 = vmatpush.msra.mxu0 %v306
    %447 = vmatpush.msra.mxu0 %v300
    %448 = vmatpush.msra.mxu0 %v294
    %449 = vmatmul.f32.gmra.mxu0 %v191
    %v450 = vpop.f32.mrf.mxu0
    %v451 = vadd.f32 %v422, %v450
    %452 = vmatmul.f32.gmra.mxu0 %v193
    %v453 = vpop.f32.mrf.mxu0
    %v454 = vadd.f32 %v425, %v453
    %455 = vmatmul.f32.gmra.mxu0 %v195
    %v456 = vpop.f32.mrf.mxu0
    %v457 = vadd.f32 %v428, %v456
    %458 = vmatmul.f32.gmra.mxu0 %v197
    %v459 = vpop.f32.mrf.mxu0
    %v460 = vadd.f32 %v431, %v459
    %461 = vdwg.mxu0
    %462 = vmatpush.msra.mxu0 %v289
    %463 = vmatpush.msra.mxu0 %v283
    %464 = vmatpush.msra.mxu0 %v277
    %465 = vmatpush.msra.mxu0 %v271
    %466 = vmatpush.msra.mxu0 %v265
    %467 = vmatpush.msra.mxu0 %v259
    %468 = vmatpush.msra.mxu0 %v253
    %469 = vmatpush.msra.mxu0 %v247
    %470 = vmatpush.msra.mxu0 %v241
    %471 = vmatpush.msra.mxu0 %v235
    %472 = vmatpush.msra.mxu0 %v229
    %473 = vmatpush.msra.mxu0 %v223
    %474 = vmatpush.msra.mxu0 %v217
    %475 = vmatpush.msra.mxu0 %v211
    %476 = vmatpush.msra.mxu0 %v205
    %477 = vmatpush.msra.mxu0 %v199
    %478 = vmatmul.f32.gmra.mxu0 %v190
    %v479 = vpop.f32.mrf.mxu0
    %v480 = vadd.f32 %v393, %v479
    %481 = vmatmul.f32.gmra.mxu0 %v192
    %v482 = vpop.f32.mrf.mxu0
    %v483 = vadd.f32 %v393, %v482
    %484 = vmatmul.f32.gmra.mxu0 %v194
    %v485 = vpop.f32.mrf.mxu0
    %v486 = vadd.f32 %v393, %v485
    %487 = vmatmul.f32.gmra.mxu0 %v196
    %v488 = vpop.f32.mrf.mxu0
    %v489 = vadd.f32 %v393, %v488
    %490 = vdwg.mxu0
    %491 = vmatpush.msra.mxu0 %v385
    %492 = vmatpush.msra.mxu0 %v379
    %493 = vmatpush.msra.mxu0 %v373
    %494 = vmatpush.msra.mxu0 %v367
    %495 = vmatpush.msra.mxu0 %v361
    %496 = vmatpush.msra.mxu0 %v355
    %497 = vmatpush.msra.mxu0 %v349
    %498 = vmatpush.msra.mxu0 %v343
    %499 = vmatpush.msra.mxu0 %v337
    %500 = vmatpush.msra.mxu0 %v331
    %501 = vmatpush.msra.mxu0 %v325
    %502 = vmatpush.msra.mxu0 %v319
    %503 = vmatpush.msra.mxu0 %v313
    %504 = vmatpush.msra.mxu0 %v307
    %505 = vmatpush.msra.mxu0 %v301
    %506 = vmatpush.msra.mxu0 %v295
    %507 = vmatmul.f32.gmra.mxu0 %v191
    %v508 = vpop.f32.mrf.mxu0
    %v509 = vadd.f32 %v480, %v508
    %510 = vmatmul.f32.gmra.mxu0 %v193
    %v511 = vpop.f32.mrf.mxu0
    %v512 = vadd.f32 %v483, %v511
    %513 = vmatmul.f32.gmra.mxu0 %v195
    %v514 = vpop.f32.mrf.mxu0
    %v515 = vadd.f32 %v486, %v514
    %516 = vmatmul.f32.gmra.mxu0 %v197
    %v517 = vpop.f32.mrf.mxu0
    %v518 = vadd.f32 %v489, %v517
    %519 = vdwg.mxu0
    %520 = vmatpush.msra.mxu0 %v290
    %521 = vmatpush.msra.mxu0 %v284
    %522 = vmatpush.msra.mxu0 %v278
    %523 = vmatpush.msra.mxu0 %v272
    %524 = vmatpush.msra.mxu0 %v266
    %525 = vmatpush.msra.mxu0 %v260
    %526 = vmatpush.msra.mxu0 %v254
    %527 = vmatpush.msra.mxu0 %v248
    %528 = vmatpush.msra.mxu0 %v242
    %529 = vmatpush.msra.mxu0 %v236
    %530 = vmatpush.msra.mxu0 %v230
    %531 = vmatpush.msra.mxu0 %v224
    %532 = vmatpush.msra.mxu0 %v218
    %533 = vmatpush.msra.mxu0 %v212
    %534 = vmatpush.msra.mxu0 %v206
    %535 = vmatpush.msra.mxu0 %v200
    %536 = vmatmul.f32.gmra.mxu0 %v190
    %v537 = vpop.f32.mrf.mxu0
    %v538 = vadd.f32 %v394, %v537
    %539 = vmatmul.f32.gmra.mxu0 %v192
    %v540 = vpop.f32.mrf.mxu0
    %v541 = vadd.f32 %v394, %v540
    %542 = vmatmul.f32.gmra.mxu0 %v194
    %v543 = vpop.f32.mrf.mxu0
    %v544 = vadd.f32 %v394, %v543
    %545 = vmatmul.f32.gmra.mxu0 %v196
    %v546 = vpop.f32.mrf.mxu0
    %v547 = vadd.f32 %v394, %v546
    %548 = vdwg.mxu0
    %549 = vmatpush.msra.mxu0 %v386
    %550 = vmatpush.msra.mxu0 %v380
    %551 = vmatpush.msra.mxu0 %v374
    %552 = vmatpush.msra.mxu0 %v368
    %553 = vmatpush.msra.mxu0 %v362
    %554 = vmatpush.msra.mxu0 %v356
    %555 = vmatpush.msra.mxu0 %v350
    %556 = vmatpush.msra.mxu0 %v344
    %557 = vmatpush.msra.mxu0 %v338
    %558 = vmatpush.msra.mxu0 %v332
    %559 = vmatpush.msra.mxu0 %v326
    %560 = vmatpush.msra.mxu0 %v320
    %561 = vmatpush.msra.mxu0 %v314
    %562 = vmatpush.msra.mxu0 %v308
    %563 = vmatpush.msra.mxu0 %v302
    %564 = vmatpush.msra.mxu0 %v296
    %565 = vmatmul.f32.gmra.mxu0 %v191
    %v566 = vpop.f32.mrf.mxu0
    %v567 = vadd.f32 %v538, %v566
    %568 = vmatmul.f32.gmra.mxu0 %v193
    %v569 = vpop.f32.mrf.mxu0
    %v570 = vadd.f32 %v541, %v569
    %571 = vmatmul.f32.gmra.mxu0 %v195
    %v572 = vpop.f32.mrf.mxu0
    %v573 = vadd.f32 %v544, %v572
    %574 = vmatmul.f32.gmra.mxu0 %v197
    %v575 = vpop.f32.mrf.mxu0
    %v576 = vadd.f32 %v547, %v575
    %577 = vdwg.mxu0
    %578 = vmatpush.msra.mxu0 %v291
    %579 = vmatpush.msra.mxu0 %v285
    %580 = vmatpush.msra.mxu0 %v279
    %581 = vmatpush.msra.mxu0 %v273
    %582 = vmatpush.msra.mxu0 %v267
    %583 = vmatpush.msra.mxu0 %v261
    %584 = vmatpush.msra.mxu0 %v255
    %585 = vmatpush.msra.mxu0 %v249
    %586 = vmatpush.msra.mxu0 %v243
    %587 = vmatpush.msra.mxu0 %v237
    %588 = vmatpush.msra.mxu0 %v231
    %589 = vmatpush.msra.mxu0 %v225
    %590 = vmatpush.msra.mxu0 %v219
    %591 = vmatpush.msra.mxu0 %v213
    %592 = vmatpush.msra.mxu0 %v207
    %593 = vmatpush.msra.mxu0 %v201
    %594 = vmatmul.f32.gmra.mxu0 %v190
    %v595 = vpop.f32.mrf.mxu0
    %v596 = vadd.f32 %v395, %v595
    %597 = vmatmul.f32.gmra.mxu0 %v192
    %v598 = vpop.f32.mrf.mxu0
    %v599 = vadd.f32 %v395, %v598
    %600 = vmatmul.f32.gmra.mxu0 %v194
    %v601 = vpop.f32.mrf.mxu0
    %v602 = vadd.f32 %v395, %v601
    %603 = vmatmul.f32.gmra.mxu0 %v196
    %v604 = vpop.f32.mrf.mxu0
    %v605 = vadd.f32 %v395, %v604
    %606 = vdwg.mxu0
    %607 = vmatpush.msra.mxu0 %v387
    %608 = vmatpush.msra.mxu0 %v381
    %609 = vmatpush.msra.mxu0 %v375
    %610 = vmatpush.msra.mxu0 %v369
    %611 = vmatpush.msra.mxu0 %v363
    %612 = vmatpush.msra.mxu0 %v357
    %613 = vmatpush.msra.mxu0 %v351
    %614 = vmatpush.msra.mxu0 %v345
    %615 = vmatpush.msra.mxu0 %v339
    %616 = vmatpush.msra.mxu0 %v333
    %617 = vmatpush.msra.mxu0 %v327
    %618 = vmatpush.msra.mxu0 %v321
    %619 = vmatpush.msra.mxu0 %v315
    %620 = vmatpush.msra.mxu0 %v309
    %621 = vmatpush.msra.mxu0 %v303
    %622 = vmatpush.msra.mxu0 %v297
    %623 = vmatmul.f32.gmra.mxu0 %v191
    %v624 = vpop.f32.mrf.mxu0
    %v625 = vadd.f32 %v596, %v624
    %626 = vmatmul.f32.gmra.mxu0 %v193
    %v627 = vpop.f32.mrf.mxu0
    %v628 = vadd.f32 %v599, %v627
    %629 = vmatmul.f32.gmra.mxu0 %v195
    %v630 = vpop.f32.mrf.mxu0
    %v631 = vadd.f32 %v602, %v630
    %632 = vmatmul.f32.gmra.mxu0 %v197
    %v633 = vpop.f32.mrf.mxu0
    %v634 = vadd.f32 %v605, %v633
    %635 = vdwg.mxu0
    %636 = vmatpush.msra.mxu0 %v292
    %637 = vmatpush.msra.mxu0 %v286
    %638 = vmatpush.msra.mxu0 %v280
    %639 = vmatpush.msra.mxu0 %v274
    %640 = vmatpush.msra.mxu0 %v268
    %641 = vmatpush.msra.mxu0 %v262
    %642 = vmatpush.msra.mxu0 %v256
    %643 = vmatpush.msra.mxu0 %v250
    %644 = vmatpush.msra.mxu0 %v244
    %645 = vmatpush.msra.mxu0 %v238
    %646 = vmatpush.msra.mxu0 %v232
    %647 = vmatpush.msra.mxu0 %v226
    %648 = vmatpush.msra.mxu0 %v220
    %649 = vmatpush.msra.mxu0 %v214
    %650 = vmatpush.msra.mxu0 %v208
    %651 = vmatpush.msra.mxu0 %v202
    %652 = vmatmul.f32.gmra.mxu0 %v190
    %v653 = vpop.f32.mrf.mxu0
    %v654 = vadd.f32 %v396, %v653
    %655 = vmatmul.f32.gmra.mxu0 %v192
    %v656 = vpop.f32.mrf.mxu0
    %v657 = vadd.f32 %v396, %v656
    %658 = vmatmul.f32.gmra.mxu0 %v194
    %v659 = vpop.f32.mrf.mxu0
    %v660 = vadd.f32 %v396, %v659
    %661 = vmatmul.f32.gmra.mxu0 %v196
    %v662 = vpop.f32.mrf.mxu0
    %v663 = vadd.f32 %v396, %v662
    %664 = vdwg.mxu0
    %665 = vmatpush.msra.mxu0 %v388
    %666 = vmatpush.msra.mxu0 %v382
    %667 = vmatpush.msra.mxu0 %v376
    %668 = vmatpush.msra.mxu0 %v370
    %669 = vmatpush.msra.mxu0 %v364
    %670 = vmatpush.msra.mxu0 %v358
    %671 = vmatpush.msra.mxu0 %v352
    %672 = vmatpush.msra.mxu0 %v346
    %673 = vmatpush.msra.mxu0 %v340
    %674 = vmatpush.msra.mxu0 %v334
    %675 = vmatpush.msra.mxu0 %v328
    %676 = vmatpush.msra.mxu0 %v322
    %677 = vmatpush.msra.mxu0 %v316
    %678 = vmatpush.msra.mxu0 %v310
    %679 = vmatpush.msra.mxu0 %v304
    %680 = vmatpush.msra.mxu0 %v298
    %681 = vmatmul.f32.gmra.mxu0 %v191
    %v682 = vpop.f32.mrf.mxu0
    %v683 = vadd.f32 %v654, %v682
    %684 = vmatmul.f32.gmra.mxu0 %v193
    %v685 = vpop.f32.mrf.mxu0
    %v686 = vadd.f32 %v657, %v685
    %687 = vmatmul.f32.gmra.mxu0 %v195
    %v688 = vpop.f32.mrf.mxu0
    %v689 = vadd.f32 %v660, %v688
    %690 = vmatmul.f32.gmra.mxu0 %v197
    %v691 = vpop.f32.mrf.mxu0
    %v692 = vadd.f32 %v663, %v691
    %693 = vdwg.mxu0
    %694 = vmatpush.msra.mxu0 %v293
    %695 = vmatpush.msra.mxu0 %v287
    %696 = vmatpush.msra.mxu0 %v281
    %697 = vmatpush.msra.mxu0 %v275
    %698 = vmatpush.msra.mxu0 %v269
    %699 = vmatpush.msra.mxu0 %v263
    %700 = vmatpush.msra.mxu0 %v257
    %701 = vmatpush.msra.mxu0 %v251
    %702 = vmatpush.msra.mxu0 %v245
    %703 = vmatpush.msra.mxu0 %v239
    %704 = vmatpush.msra.mxu0 %v233
    %705 = vmatpush.msra.mxu0 %v227
    %706 = vmatpush.msra.mxu0 %v221
    %707 = vmatpush.msra.mxu0 %v215
    %708 = vmatpush.msra.mxu0 %v209
    %709 = vmatpush.msra.mxu0 %v203
    %710 = vmatmul.f32.gmra.mxu0 %v190
    %v711 = vpop.f32.mrf.mxu0
    %v712 = vadd.f32 %v397, %v711
    %713 = vmatmul.f32.gmra.mxu0 %v192
    %v714 = vpop.f32.mrf.mxu0
    %v715 = vadd.f32 %v397, %v714
    %716 = vmatmul.f32.gmra.mxu0 %v194
    %v717 = vpop.f32.mrf.mxu0
    %v718 = vadd.f32 %v397, %v717
    %719 = vmatmul.f32.gmra.mxu0 %v196
    %v720 = vpop.f32.mrf.mxu0
    %v721 = vadd.f32 %v397, %v720
    %722 = vdwg.mxu0
    %723 = vmatpush.msra.mxu0 %v389
    %724 = vmatpush.msra.mxu0 %v383
    %725 = vmatpush.msra.mxu0 %v377
    %726 = vmatpush.msra.mxu0 %v371
    %727 = vmatpush.msra.mxu0 %v365
    %728 = vmatpush.msra.mxu0 %v359
    %729 = vmatpush.msra.mxu0 %v353
    %730 = vmatpush.msra.mxu0 %v347
    %731 = vmatpush.msra.mxu0 %v341
    %732 = vmatpush.msra.mxu0 %v335
    %733 = vmatpush.msra.mxu0 %v329
    %734 = vmatpush.msra.mxu0 %v323
    %735 = vmatpush.msra.mxu0 %v317
    %736 = vmatpush.msra.mxu0 %v311
    %737 = vmatpush.msra.mxu0 %v305
    %738 = vmatpush.msra.mxu0 %v299
    %739 = vmatmul.f32.gmra.mxu0 %v191
    %v740 = vpop.f32.mrf.mxu0
    %v741 = vadd.f32 %v712, %v740
    %742 = vmatmul.f32.gmra.mxu0 %v193
    %v743 = vpop.f32.mrf.mxu0
    %v744 = vadd.f32 %v715, %v743
    %745 = vmatmul.f32.gmra.mxu0 %v195
    %v746 = vpop.f32.mrf.mxu0
    %v747 = vadd.f32 %v718, %v746
    %748 = vmatmul.f32.gmra.mxu0 %v197
    %v749 = vpop.f32.mrf.mxu0
    %v750 = vadd.f32 %v721, %v749
    %751 = vdwg.mxu0
    %752 = vst [vmem:[%s5] sm:$0xff] %v451
    %753 = vst [vmem:[%s5 + $0x8] sm:$0xff] %v509
    %754 = vst [vmem:[%s5 + $0x10] sm:$0xff] %v454
    %755 = vst [vmem:[%s5 + $0x18] sm:$0xff] %v512
    %756 = vst [vmem:[%s5 + $0x20] sm:$0xff] %v457
    %757 = vst [vmem:[%s5 + $0x28] sm:$0xff] %v515
    %758 = vst [vmem:[%s5 + $0x30] sm:$0xff] %v460
    %759 = vst [vmem:[%s5 + $0x38] sm:$0xff] %v518
    %760 = vst [vmem:[%s6] sm:$0xff] %v567
    %761 = vst [vmem:[%s6 + $0x8] sm:$0xff] %v625
    %762 = vst [vmem:[%s6 + $0x10] sm:$0xff] %v570
    %763 = vst [vmem:[%s6 + $0x18] sm:$0xff] %v628
    %764 = vst [vmem:[%s6 + $0x20] sm:$0xff] %v573
    %765 = vst [vmem:[%s6 + $0x28] sm:$0xff] %v631
    %766 = vst [vmem:[%s6 + $0x30] sm:$0xff] %v576
    %767 = vst [vmem:[%s6 + $0x38] sm:$0xff] %v634
    %768 = vst [vmem:[%s7] sm:$0xff] %v683
    %769 = vst [vmem:[%s7 + $0x8] sm:$0xff] %v741
    %770 = vst [vmem:[%s7 + $0x10] sm:$0xff] %v686
    %771 = vst [vmem:[%s7 + $0x18] sm:$0xff] %v744
    %772 = vst [vmem:[%s7 + $0x20] sm:$0xff] %v689
    %773 = vst [vmem:[%s7 + $0x28] sm:$0xff] %v747
    %774 = vst [vmem:[%s7 + $0x30] sm:$0xff] %v692
    %775 = vst [vmem:[%s7 + $0x38] sm:$0xff] %v750
    // Predicated region
    $region30: #{mhsa_forward.4} parent=1 // pred_check
      _
    $region31: #{mhsa_forward.4} parent=1 // pred_check_branch
      %777 = sbr.rel (0) target = $region33
    $region32: #{mhsa_forward.4} parent=1 // pred_region
      _
    $region33: #{mhsa_forward.4} parent=1 // pred_fallthru
      _
    // Predicated region
    $region34: #{mhsa_forward.4} parent=1 // pred_check
      _
    $region35: #{mhsa_forward.4} parent=1 // pred_check_branch
      %779 = sbr.rel (0) target = $region37
    $region36: #{mhsa_forward.4} parent=1 // pred_region
      _
    $region37: #{mhsa_forward.4} parent=1 // pred_fallthru
      _
    // Predicated region
    $region38: #{mhsa_forward.4} parent=1 // pred_check
      _
    $region39: #{mhsa_forward.4} parent=1 // pred_check_branch
      %781 = sbr.rel (0) target = $region41
    $region40: #{mhsa_forward.4} parent=1 // pred_region
      _
    $region41: #{mhsa_forward.4} parent=1 // pred_fallthru
      _
    // Predicated region
    $region42: #{mhsa_forward.4} parent=1 // pred_check
      _
    $region43: #{mhsa_forward.4} parent=1 // pred_check_branch
      %783 = sbr.rel (0) target = $region45
    $region44: #{mhsa_forward.4} parent=1 // pred_region
      _
    $region45: #{mhsa_forward.4} parent=1 // pred_fallthru
      _
    // Predicated region
    $region46: #{mhsa_forward.4} parent=1 // pred_check
      _
    $region47: #{mhsa_forward.4} parent=1 // pred_check_branch
      %785 = sbr.rel (0) target = $region49
    $region48: #{mhsa_forward.4} parent=1 // pred_region
      _
    $region49: #{mhsa_forward.4} parent=1 // pred_fallthru
      _
    // Predicated region
    $region50: #{mhsa_forward.4} parent=1 // pred_check
      _
    $region51: #{mhsa_forward.4} parent=1 // pred_check_branch
      %787 = sbr.rel (0) target = $region53
    $region52: #{mhsa_forward.4} parent=1 // pred_region
      _
    $region53: #{mhsa_forward.4} parent=1 // pred_fallthru
      _
    %788 = vsyncpa [#allocation3], 1
    %789 = vsyncpa [#allocation5], 1

// kernel: mhsa_forward.6
$region0: #{mhsa_forward.6}
  #allocation0 [shape = 'u32[]', space=smem, size = 0x4, offset = 0x4, fixed_abs, tag = 'smem constant byte address 0x4 - core index']
  #allocation1 [shape = 'u32[72,128]{1,0:T(1,128)}', space=vmem, size = 0x9000, scoped, tag = 'internal scratch']
  %s0 = inlined_call_operand.vmem [shape: f32[2,2,16,128], index: 0, kind: input, shape index: {}]
  %s1 = inlined_call_operand.vmem [shape: f32[2,2,16,128], index: 1, kind: input, shape index: {}]
  %s2 = inlined_call_operand.vmem [shape: f32[2,2,16,128], index: 2, kind: input, shape index: {}]
  %s3 = inlined_call_operand.vmem [shape: f32[1,2,128,128], index: 3, kind: input, shape index: {}]
  %s4 = inlined_call_operand.vmem [shape: f32[1,2,1,128], index: 4, kind: input, shape index: {}]
  %s5 = inlined_call_operand.vmem [shape: f32[1,2,1,128], index: 5, kind: input, shape index: {}]
  %s6 = inlined_call_operand.vmem [shape: f32[2,16,1], index: 6, kind: input, shape index: {}]
  %s7 = inlined_call_operand.vmem [shape: f32[2,2,16,128], index: 7, kind: output, shape index: {}]
  %s8 = sld [smem:[#allocation0]]
  $region61: #{mhsa_forward.6} parent=0
    _
  %s10 = ssub.s32 1, %s8
  %s11 = scalar_select 0, %s10, %s8
  loop: start=0, step=1, limit=4
  $region2: #{mhsa_forward.6} parent=0 // loop_pre_header
    _
  $region3: #{mhsa_forward.6} parent=0 // loop_header
    %s13 = sphi 0, %s17
    %p14 = scmp.ge.s32.totalorder %s13, 4
    %s23 = sphi 0, %s25
    %s26 = sphi 0, %s23
    %s27 = sphi 0, %s26
    %s43 = sphi 0, %s27
    %s49 = sphi 0, %s51
    %s52 = sphi 0, %s49
    %s53 = sphi 0, %s52
    %s69 = sphi 0, %s53
    %s75 = sphi 0, %s77
    %s78 = sphi 0, %s75
    %s79 = sphi 0, %s78
    %s95 = sphi 0, %s79
    %s99 = sphi 0, %s99
    %s101 = sphi 0, %s99
    %s102 = sphi 0, %s101
    %s116 = sphi 0, %s102
    %s120 = sphi 0, %s120
    %s122 = sphi 0, %s120
    %s123 = sphi 0, %s122
    %s137 = sphi 0, %s123
    %s141 = sphi 0, %s141
    %s143 = sphi 0, %s141
    %s144 = sphi 0, %s143
    %s158 = sphi 0, %s144
    %s164 = sphi 0, %s166
    %s167 = sphi 0, %s164
    %s168 = sphi 0, %s167
    %s184 = sphi 0, %s168
    %s190 = sphi 0, %s192
    %s193 = sphi 0, %s190
    %s194 = sphi 0, %s193
    %s210 = sphi 0, %s194
  $region4: #{mhsa_forward.6} parent=0 // loop_header_branch
    %16 = sbr.rel (%p14) target = $region8
  $region5: #{mhsa_forward.6} parent=0 // loop_body
    %s18 = ssub.s32 %s13, 1
    %s19 = ssub.s32 %s13, 2
    %s20 = sadd.s32 %s13, 1
    %s21 = ssub.s32 %s13, %s20
    %p22 = scmp.eq.s32.totalorder %s21, 0
    %s24 = sadd.s32 %s23, 1
    %s25 = scalar_select %p22, %s23, %s24
    %p28 = pneg %p22
    %p29 = scmp.eq.s32.totalorder %s13, 1
    %p30 = por %p28, %p29
    %p31 = scmp.ne.s32.totalorder %s23, %s26
    %p32 = scmp.eq.s32.totalorder %s13, 0
    %p33 = por %p31, %p32
    %p34 = scmp.ne.s32.totalorder %s23, %s26
    %p35 = scmp.eq.s32.totalorder %s18, 1
    %p36 = por %p34, %p35
    %p37 = scmp.ne.s32.totalorder %s26, %s27
    %p38 = scmp.eq.s32.totalorder %s18, 0
    %p39 = por %p37, %p38
    %p40 = scmp.ne.s32.totalorder %s26, %s27
    %p41 = scmp.eq.s32.totalorder %s19, 1
    %p42 = por %p40, %p41
    %p44 = scmp.ne.s32.totalorder %s27, %s43
    %p45 = scmp.eq.s32.totalorder %s19, 0
    %p46 = por %p44, %p45
    %s47 = ssub.s32 %s13, %s20
    %p48 = scmp.eq.s32.totalorder %s47, 0
    %s50 = sadd.s32 %s49, 1
    %s51 = scalar_select %p48, %s49, %s50
    %p54 = pneg %p48
    %p55 = scmp.eq.s32.totalorder %s13, 1
    %p56 = por %p54, %p55
    %p57 = scmp.ne.s32.totalorder %s49, %s52
    %p58 = scmp.eq.s32.totalorder %s13, 0
    %p59 = por %p57, %p58
    %p60 = scmp.ne.s32.totalorder %s49, %s52
    %p61 = scmp.eq.s32.totalorder %s18, 1
    %p62 = por %p60, %p61
    %p63 = scmp.ne.s32.totalorder %s52, %s53
    %p64 = scmp.eq.s32.totalorder %s18, 0
    %p65 = por %p63, %p64
    %p66 = scmp.ne.s32.totalorder %s52, %s53
    %p67 = scmp.eq.s32.totalorder %s19, 1
    %p68 = por %p66, %p67
    %p70 = scmp.ne.s32.totalorder %s53, %s69
    %p71 = scmp.eq.s32.totalorder %s19, 0
    %p72 = por %p70, %p71
    %s73 = ssub.s32 %s13, %s20
    %p74 = scmp.eq.s32.totalorder %s73, 0
    %s76 = sadd.s32 %s75, 1
    %s77 = scalar_select %p74, %s75, %s76
    %p80 = pneg %p74
    %p81 = scmp.eq.s32.totalorder %s13, 1
    %p82 = por %p80, %p81
    %p83 = scmp.ne.s32.totalorder %s75, %s78
    %p84 = scmp.eq.s32.totalorder %s13, 0
    %p85 = por %p83, %p84
    %p86 = scmp.ne.s32.totalorder %s75, %s78
    %p87 = scmp.eq.s32.totalorder %s18, 1
    %p88 = por %p86, %p87
    %p89 = scmp.ne.s32.totalorder %s78, %s79
    %p90 = scmp.eq.s32.totalorder %s18, 0
    %p91 = por %p89, %p90
    %p92 = scmp.ne.s32.totalorder %s78, %s79
    %p93 = scmp.eq.s32.totalorder %s19, 1
    %p94 = por %p92, %p93
    %p96 = scmp.ne.s32.totalorder %s79, %s95
    %p97 = scmp.eq.s32.totalorder %s19, 0
    %p98 = por %p96, %p97
    %s100 = sadd.s32 %s99, 1
    %p103 = scmp.eq.s32.totalorder %s13, 1
    %p104 = scmp.ne.s32.totalorder %s99, %s101
    %p105 = scmp.eq.s32.totalorder %s13, 0
    %p106 = por %p104, %p105
    %p107 = scmp.ne.s32.totalorder %s99, %s101
    %p108 = scmp.eq.s32.totalorder %s18, 1
    %p109 = por %p107, %p108
    %p110 = scmp.ne.s32.totalorder %s101, %s102
    %p111 = scmp.eq.s32.totalorder %s18, 0
    %p112 = por %p110, %p111
    %p113 = scmp.ne.s32.totalorder %s101, %s102
    %p114 = scmp.eq.s32.totalorder %s19, 1
    %p115 = por %p113, %p114
    %p117 = scmp.ne.s32.totalorder %s102, %s116
    %p118 = scmp.eq.s32.totalorder %s19, 0
    %p119 = por %p117, %p118
    %s121 = sadd.s32 %s120, 1
    %p124 = scmp.eq.s32.totalorder %s13, 1
    %p125 = scmp.ne.s32.totalorder %s120, %s122
    %p126 = scmp.eq.s32.totalorder %s13, 0
    %p127 = por %p125, %p126
    %p128 = scmp.ne.s32.totalorder %s120, %s122
    %p129 = scmp.eq.s32.totalorder %s18, 1
    %p130 = por %p128, %p129
    %p131 = scmp.ne.s32.totalorder %s122, %s123
    %p132 = scmp.eq.s32.totalorder %s18, 0
    %p133 = por %p131, %p132
    %p134 = scmp.ne.s32.totalorder %s122, %s123
    %p135 = scmp.eq.s32.totalorder %s19, 1
    %p136 = por %p134, %p135
    %p138 = scmp.ne.s32.totalorder %s123, %s137
    %p139 = scmp.eq.s32.totalorder %s19, 0
    %p140 = por %p138, %p139
    %s142 = sadd.s32 %s141, 1
    %p145 = scmp.eq.s32.totalorder %s13, 1
    %p146 = scmp.ne.s32.totalorder %s141, %s143
    %p147 = scmp.eq.s32.totalorder %s13, 0
    %p148 = por %p146, %p147
    %p149 = scmp.ne.s32.totalorder %s141, %s143
    %p150 = scmp.eq.s32.totalorder %s18, 1
    %p151 = por %p149, %p150
    %p152 = scmp.ne.s32.totalorder %s143, %s144
    %p153 = scmp.eq.s32.totalorder %s18, 0
    %p154 = por %p152, %p153
    %p155 = scmp.ne.s32.totalorder %s143, %s144
    %p156 = scmp.eq.s32.totalorder %s19, 1
    %p157 = por %p155, %p156
    %p159 = scmp.ne.s32.totalorder %s144, %s158
    %p160 = scmp.eq.s32.totalorder %s19, 0
    %p161 = por %p159, %p160
    %s162 = ssub.s32 %s13, %s20
    %p163 = scmp.eq.s32.totalorder %s162, 0
    %s165 = sadd.s32 %s164, 1
    %s166 = scalar_select %p163, %s164, %s165
    %p169 = pneg %p163
    %p170 = scmp.eq.s32.totalorder %s13, 1
    %p171 = por %p169, %p170
    %p172 = scmp.ne.s32.totalorder %s164, %s167
    %p173 = scmp.eq.s32.totalorder %s13, 0
    %p174 = por %p172, %p173
    %p175 = scmp.ne.s32.totalorder %s164, %s167
    %p176 = scmp.eq.s32.totalorder %s18, 1
    %p177 = por %p175, %p176
    %p178 = scmp.ne.s32.totalorder %s167, %s168
    %p179 = scmp.eq.s32.totalorder %s18, 0
    %p180 = por %p178, %p179
    %p181 = scmp.ne.s32.totalorder %s167, %s168
    %p182 = scmp.eq.s32.totalorder %s19, 1
    %p183 = por %p181, %p182
    %p185 = scmp.ne.s32.totalorder %s168, %s184
    %p186 = scmp.eq.s32.totalorder %s19, 0
    %p187 = por %p185, %p186
    %s188 = ssub.s32 %s13, %s20
    %p189 = scmp.eq.s32.totalorder %s188, 0
    %s191 = sadd.s32 %s190, 1
    %s192 = scalar_select %p189, %s190, %s191
    %p195 = pneg %p189
    %p196 = scmp.eq.s32.totalorder %s13, 1
    %p197 = por %p195, %p196
    %p198 = scmp.ne.s32.totalorder %s190, %s193
    %p199 = scmp.eq.s32.totalorder %s13, 0
    %p200 = por %p198, %p199
    %p201 = scmp.ne.s32.totalorder %s190, %s193
    %p202 = scmp.eq.s32.totalorder %s18, 1
    %p203 = por %p201, %p202
    %p204 = scmp.ne.s32.totalorder %s193, %s194
    %p205 = scmp.eq.s32.totalorder %s18, 0
    %p206 = por %p204, %p205
    %p207 = scmp.ne.s32.totalorder %s193, %s194
    %p208 = scmp.eq.s32.totalorder %s19, 1
    %p209 = por %p207, %p208
    %p211 = scmp.ne.s32.totalorder %s194, %s210
    %p212 = scmp.eq.s32.totalorder %s19, 0
    %p213 = por %p211, %p212
    %p214 = scmp.le.s32.totalorder 1, %s13
    %p215 = scmp.lt.s32.totalorder %s13, 3
    %p216 = pnand %p214, %p215
    %p217 = pneg %p216
    // Predicated region
    $region9: #{mhsa_forward.6} parent=5 // pred_check
      _
    $region10: #{mhsa_forward.6} parent=5 // pred_check_branch
      %219 = sbr.rel (%p216) target = $region12
    $region11: #{mhsa_forward.6} parent=5 // pred_region
      %s220 = ssub.s32 %s13, 1
      // Predicated region
      $region13: #{mhsa_forward.6} parent=11 // pred_check
        %p221 = pneg %p112
      $region14: #{mhsa_forward.6} parent=11 // pred_check_branch
        %223 = sbr.rel (%p221) target = $region16
      $region15: #{mhsa_forward.6} parent=11 // pred_region
        _
      $region16: #{mhsa_forward.6} parent=11 // pred_fallthru
        _
      // Predicated region
      $region17: #{mhsa_forward.6} parent=11 // pred_check
        %p224 = pneg %p133
      $region18: #{mhsa_forward.6} parent=11 // pred_check_branch
        %226 = sbr.rel (%p224) target = $region20
      $region19: #{mhsa_forward.6} parent=11 // pred_region
        _
      $region20: #{mhsa_forward.6} parent=11 // pred_fallthru
        _
      // Predicated region
      $region21: #{mhsa_forward.6} parent=11 // pred_check
        %p227 = pneg %p154
      $region22: #{mhsa_forward.6} parent=11 // pred_check_branch
        %229 = sbr.rel (%p227) target = $region24
      $region23: #{mhsa_forward.6} parent=11 // pred_region
        _
      $region24: #{mhsa_forward.6} parent=11 // pred_fallthru
        _
    $region12: #{mhsa_forward.6} parent=5 // pred_fallthru
      _
    %p230 = scmp.lt.s32.totalorder %s13, 2
    // Predicated region
    $region25: #{mhsa_forward.6} parent=5 // pred_check
      %p231 = pneg %p230
    $region26: #{mhsa_forward.6} parent=5 // pred_check_branch
      %233 = sbr.rel (%p231) target = $region28
    $region27: #{mhsa_forward.6} parent=5 // pred_region
      // Predicated region
      $region29: #{mhsa_forward.6} parent=27 // pred_check
        %p234 = pneg %p33
      $region30: #{mhsa_forward.6} parent=27 // pred_check_branch
        %236 = sbr.rel (%p234) target = $region32
      $region31: #{mhsa_forward.6} parent=27 // pred_region
        %p237 = scmp.lt.s32.totalorder %s13, 1
        %s238 = scalar_select %p237, %s13, 1
        %s239 = smul.addr %s238, 4
        %s240 = smul.addr %s239, 8
        %s241 = scalar_lea.vmem %s0, %s240
      $region32: #{mhsa_forward.6} parent=27 // pred_fallthru
        _
      // Predicated region
      $region33: #{mhsa_forward.6} parent=27 // pred_check
        %p242 = pneg %p59
      $region34: #{mhsa_forward.6} parent=27 // pred_check_branch
        %244 = sbr.rel (%p242) target = $region36
      $region35: #{mhsa_forward.6} parent=27 // pred_region
        %p245 = scmp.lt.s32.totalorder %s13, 1
        %s246 = scalar_select %p245, %s13, 1
        %s247 = smul.addr %s246, 4
        %s248 = smul.addr %s247, 8
        %s249 = scalar_lea.vmem %s1, %s248
      $region36: #{mhsa_forward.6} parent=27 // pred_fallthru
        _
      // Predicated region
      $region37: #{mhsa_forward.6} parent=27 // pred_check
        %p250 = pneg %p85
      $region38: #{mhsa_forward.6} parent=27 // pred_check_branch
        %252 = sbr.rel (%p250) target = $region40
      $region39: #{mhsa_forward.6} parent=27 // pred_region
        %p253 = scmp.lt.s32.totalorder %s13, 1
        %s254 = scalar_select %p253, %s13, 1
        %s255 = smul.addr %s254, 4
        %s256 = smul.addr %s255, 8
        %s257 = scalar_lea.vmem %s2, %s256
      $region40: #{mhsa_forward.6} parent=27 // pred_fallthru
        _
      // Predicated region
      $region41: #{mhsa_forward.6} parent=27 // pred_check
        %p258 = pneg %p174
      $region42: #{mhsa_forward.6} parent=27 // pred_check_branch
        %260 = sbr.rel (%p258) target = $region44
      $region43: #{mhsa_forward.6} parent=27 // pred_region
        %p261 = scmp.lt.s32.totalorder %s13, 1
        %s262 = scalar_select %p261, %s13, 1
        %s263 = smul.addr %s262, 2
        %s264 = smul.addr %s263, 8
        %s265 = scalar_lea.vmem %s6, %s264
      $region44: #{mhsa_forward.6} parent=27 // pred_fallthru
        _
    $region28: #{mhsa_forward.6} parent=5 // pred_fallthru
      _
    %p266 = scmp.le.s32.totalorder 1, %s13
    %p267 = scmp.lt.s32.totalorder %s13, 3
    %p268 = pnand %p266, %p267
    %p269 = pneg %p268
    // Predicated region
    $region45: #{mhsa_forward.6} parent=5 // pred_check
      _
    $region46: #{mhsa_forward.6} parent=5 // pred_check_branch
      %271 = sbr.rel (%p268) target = $region48
    $region47: #{mhsa_forward.6} parent=5 // pred_region
      %s272 = ssub.s32 %s13, 1
      %p273 = scmp.lt.s32.totalorder %s18, 1
      %s274 = scalar_select %p273, %s18, 1
      %s275 = smul.addr %s274, 4
      %s276 = smul.addr %s275, 8
      %s277 = scalar_lea.vmem %s0, %s276
      %p278 = pneg %p39
      %p279 = pneg %p36
      %p280 = scmp.lt.s32.totalorder %s18, 1
      %s281 = scalar_select %p280, %s18, 1
      %s282 = smul.addr %s281, 4
      %s283 = smul.addr %s282, 8
      %s284 = scalar_lea.vmem %s1, %s283
      %p285 = pneg %p65
      %p286 = pneg %p62
      %p287 = scmp.lt.s32.totalorder %s18, 1
      %s288 = scalar_select %p287, %s18, 1
      %s289 = smul.addr %s288, 4
      %s290 = smul.addr %s289, 8
      %s291 = scalar_lea.vmem %s2, %s290
      %p292 = pneg %p91
      %p293 = pneg %p88
      %p294 = pneg %p112
      %p295 = pneg %p109
      %p296 = pneg %p133
      %p297 = pneg %p130
      %p298 = pneg %p154
      %p299 = pneg %p151
      %p300 = scmp.lt.s32.totalorder %s18, 1
      %s301 = scalar_select %p300, %s18, 1
      %s302 = smul.addr %s301, 2
      %s303 = smul.addr %s302, 8
      %s304 = scalar_lea.vmem %s6, %s303
      %p305 = pneg %p180
      %p306 = pneg %p177
      %p307 = pneg %p206
      %p308 = pneg %p203
      %p309 = scmp.lt.s32.totalorder %s18, 1
      %s310 = scalar_select %p309, %s18, 1
      %s311 = smul.addr %s310, 4
      %s312 = smul.addr %s311, 8
      %s313 = scalar_lea.vmem %s7, %s312
      %p314 = scmp.lt.s32.totalorder %s18, 1
      %s315 = scalar_select %p314, %s18, 1
      %s316 = smul.addr %s315, 4
      %s317 = smul.addr %s316, 8
      %s318 = scalar_lea.vmem %s0, %s317
      %p319 = scmp.lt.s32.totalorder %s18, 1
      %s320 = scalar_select %p319, %s18, 1
      %s321 = smul.addr %s320, 4
      %s322 = smul.addr %s321, 8
      %s323 = scalar_lea.vmem %s1, %s322
      %p324 = scmp.lt.s32.totalorder %s18, 1
      %s325 = scalar_select %p324, %s18, 1
      %s326 = smul.addr %s325, 4
      %s327 = smul.addr %s326, 8
      %s328 = scalar_lea.vmem %s2, %s327
      %p329 = scmp.lt.s32.totalorder %s18, 1
      %s330 = scalar_select %p329, %s18, 1
      %s331 = smul.addr %s330, 2
      %s332 = smul.addr %s331, 8
      %s333 = scalar_lea.vmem %s6, %s332
      %p334 = scmp.lt.s32.totalorder %s18, 1
      %s335 = scalar_select %p334, %s18, 1
      %s336 = smul.addr %s335, 4
      %s337 = smul.addr %s336, 8
      %s338 = scalar_lea.vmem %s7, %s337
      %v339 = vld [vmem:[%s333] sm:$0xff]
      %v340 = vld [vmem:[%s333 + $0x8] sm:$0xff]
      %vm341 = vcmp.eq.f32.partialorder %v339, 0.0
      %vm342 = vcmp.eq.f32.partialorder %v340, 0.0
      %v343 = vld [vmem:[%s318] sm:$0xff]
      %v344 = vld [vmem:[%s318 + $0x8] sm:$0xff]
      %v345 = vld [vmem:[%s4] sm:$0x1]
      %v347 = vperm.slane %v345, 0
      %v349 = vadd.f32 %v343, %v347
      %v350 = vadd.f32 %v344, %v347
      %v351 = vmul.f32 %v349, 0.088388346
      %v352 = vmul.f32 %v350, 0.088388346
      %v353 = vld [vmem:[%s5] sm:$0x1]
      %v355 = vperm.slane %v353, 0
      %v357 = vadd.f32 %v343, %v355
      %v358 = vadd.f32 %v344, %v355
      %v359 = vmul.f32 %v357, 0.088388346
      %v360 = vmul.f32 %v358, 0.088388346
      %v361 = vld [vmem:[%s323] sm:$0xff]
      %v362 = vld [vmem:[%s323 + $0x8] sm:$0xff]
      %v363 = vld [vmem:[%s3] sm:$0xff]
      %v364 = vld [vmem:[%s3 + $0x8] sm:$0xff]
      %v365 = vld [vmem:[%s3 + $0x10] sm:$0xff]
      %v366 = vld [vmem:[%s3 + $0x18] sm:$0xff]
      %v367 = vld [vmem:[%s3 + $0x20] sm:$0xff]
      %v368 = vld [vmem:[%s3 + $0x28] sm:$0xff]
      %v369 = vld [vmem:[%s3 + $0x30] sm:$0xff]
      %v370 = vld [vmem:[%s3 + $0x38] sm:$0xff]
      %v371 = vld [vmem:[%s3 + $0x40] sm:$0xff]
      %v372 = vld [vmem:[%s3 + $0x48] sm:$0xff]
      %v373 = vld [vmem:[%s3 + $0x50] sm:$0xff]
      %v374 = vld [vmem:[%s3 + $0x58] sm:$0xff]
      %v375 = vld [vmem:[%s3 + $0x60] sm:$0xff]
      %v376 = vld [vmem:[%s3 + $0x68] sm:$0xff]
      %v377 = vld [vmem:[%s3 + $0x70] sm:$0xff]
      %v378 = vld [vmem:[%s3 + $0x78] sm:$0xff]
      %379 = vmatpush.xpose.msra.mxu0 %v378
      %380 = vmatpush.xpose.msra.mxu0 %v377
      %381 = vmatpush.xpose.msra.mxu0 %v376
      %382 = vmatpush.xpose.msra.mxu0 %v375
      %383 = vmatpush.xpose.msra.mxu0 %v374
      %384 = vmatpush.xpose.msra.mxu0 %v373
      %385 = vmatpush.xpose.msra.mxu0 %v372
      %386 = vmatpush.xpose.msra.mxu0 %v371
      %387 = vmatpush.xpose.msra.mxu0 %v370
      %388 = vmatpush.xpose.msra.mxu0 %v369
      %389 = vmatpush.xpose.msra.mxu0 %v368
      %390 = vmatpush.xpose.msra.mxu0 %v367
      %391 = vmatpush.xpose.msra.mxu0 %v366
      %392 = vmatpush.xpose.msra.mxu0 %v365
      %393 = vmatpush.xpose.msra.mxu0 %v364
      %394 = vmatpush.xpose.msra.mxu0 %v363
      %395 = vmatmul.f32.gmra.mxu0 %v359
      %v396 = vpop.f32.mrf.mxu0
      %v397 = vadd.f32 0.0, %v396
      %398 = vmatmul.f32.gmra.mxu0 %v360
      %v399 = vpop.f32.mrf.mxu0
      %v400 = vadd.f32 0.0, %v399
      %401 = vdwg.mxu0
      %s403 = sor.u32 256, 113
      %404 = vrot.lane.b32.xlu0 %v397, %s403
      %v405 = vpop.permute.xlu0 %404
      %s407 = sor.u32 256, 121
      %408 = vrot.lane.b32.xlu0 %v400, %s407
      %v409 = vpop.permute.xlu0 %408
      %410 = vmatpush.xpose.msra.mxu0 0.0
      %411 = vmatpush.xpose.msra.mxu0 0.0
      %412 = vmatpush.xpose.msra.mxu0 0.0
      %413 = vmatpush.xpose.msra.mxu0 0.0
      %414 = vmatpush.xpose.msra.mxu0 0.0
      %415 = vmatpush.xpose.msra.mxu0 0.0
      %416 = vmatpush.xpose.msra.mxu0 0.0
      %417 = vmatpush.xpose.msra.mxu0 0.0
      %418 = vmatpush.xpose.msra.mxu0 0.0
      %419 = vmatpush.xpose.msra.mxu0 0.0
      %420 = vmatpush.xpose.msra.mxu0 0.0
      %421 = vmatpush.xpose.msra.mxu0 0.0
      %422 = vmatpush.xpose.msra.mxu0 0.0
      %423 = vmatpush.xpose.msra.mxu0 0.0
      %424 = vmatpush.xpose.msra.mxu0 %v362
      %425 = vmatpush.xpose.msra.mxu0 %v361
      %426 = vmatmul.f32.gmra.mxu0 %v351
      %v427 = vpop.f32.mrf.mxu0
      %v428 = vadd.f32 %v405, %v427
      %429 = vmatmul.f32.gmra.mxu0 %v352
      %v430 = vpop.f32.mrf.mxu0
      %v431 = vadd.f32 %v409, %v430
      %432 = vdwg.mxu0
      %vm433 = vcmask 130048
      %v434 = vsel %vm433, %v428, -inf
      %435 = vmax.xlane.f32.xlu0 %v434
      %v436 = vpop.xlane.xlu0 %435
      %v437 = vsel %vm433, %v431, -inf
      %438 = vmax.xlane.f32.xlu0 %v437
      %v439 = vpop.xlane.xlu0 %438
      %v440 = vsub.f32 %v428, %v436
      %v441 = vsub.f32 %v431, %v439
      %v442 = vmul.f32 %v440, 1.442695
      %v443 = vpow.pop %v442
      %v444 = vmul.f32 %v441, 1.442695
      %v445 = vpow.pop %v444
      %v446 = vsel %vm433, %v443, 0.0
      %447 = vadd.xlane.f32.xlu0 %v446
      %v448 = vpop.xlane.xlu0 %447
      %v449 = vsel %vm433, %v445, 0.0
      %450 = vadd.xlane.f32.xlu0 %v449
      %v451 = vpop.xlane.xlu0 %450
      %v452 = vrcp.pop %v448
      %v453 = vrcp.pop %v451
      %v454 = vmul.f32 %v443, %v452
      %v455 = vmul.f32 %v445, %v453
      %v456 = vsel %vm341, 1, 0
      %v457 = vsel %vm342, 1, 0
      %458 = vset.pattern.permute.xlu0 0
      %459 = vperm.xlu0 %458, %v456
      %v460 = vpop.permute.xlu0 %459
      %461 = vset.pattern.permute.xlu0 0
      %462 = vperm.xlu0 %461, %v457
      %v463 = vpop.permute.xlu0 %462
      %vm464 = vcmp.eq.s32.totalorder %v460, 1
      %vm465 = vcmp.eq.s32.totalorder %v463, 1
      %v466 = vsel %vm464, 0.0, %v454
      %v467 = vsel %vm465, 0.0, %v455
      %v468 = vld [vmem:[%s328] sm:$0xff]
      %v469 = vld [vmem:[%s328 + $0x8] sm:$0xff]
      %v471 = vsel %vm433, %v466, 0
      %v474 = vsel %vm433, %v467, 0
      %476 = vmatpush.msra.mxu0 0.0
      %477 = vmatpush.msra.mxu0 0.0
      %478 = vmatpush.msra.mxu0 0.0
      %479 = vmatpush.msra.mxu0 0.0
      %480 = vmatpush.msra.mxu0 0.0
      %481 = vmatpush.msra.mxu0 0.0
      %482 = vmatpush.msra.mxu0 0.0
      %483 = vmatpush.msra.mxu0 0.0
      %484 = vmatpush.msra.mxu0 0.0
      %485 = vmatpush.msra.mxu0 0.0
      %486 = vmatpush.msra.mxu0 0.0
      %487 = vmatpush.msra.mxu0 0.0
      %488 = vmatpush.msra.mxu0 0.0
      %489 = vmatpush.msra.mxu0 0.0
      %490 = vmatpush.msra.mxu0 %v469
      %491 = vmatpush.msra.mxu0 %v468
      %492 = vmatmul.f32.gmra.mxu0 %v471
      %v493 = vpop.f32.mrf.mxu0
      %v494 = vadd.f32 0.0, %v493
      %495 = vmatmul.f32.gmra.mxu0 %v474
      %v496 = vpop.f32.mrf.mxu0
      %v497 = vadd.f32 0.0, %v496
      %498 = vdwg.mxu0
      %499 = vst [vmem:[%s338] sm:$0xff] %v494
      %500 = vst [vmem:[%s338 + $0x8] sm:$0xff] %v497
      %s501 = scalar_lea.vmem %s318, 16
      %v502 = vld [vmem:[%s501] sm:$0xff]
      %v503 = vld [vmem:[%s501 + $0x8] sm:$0xff]
      %s504 = scalar_lea.vmem %s4, 1
      %v505 = vld [vmem:[%s504] sm:$0x1]
      %v507 = vperm.slane %v505, 0
      %v509 = vadd.f32 %v502, %v507
      %v510 = vadd.f32 %v503, %v507
      %v511 = vmul.f32 %v509, 0.088388346
      %v512 = vmul.f32 %v510, 0.088388346
      %s513 = scalar_lea.vmem %s5, 1
      %v514 = vld [vmem:[%s513] sm:$0x1]
      %v516 = vperm.slane %v514, 0
      %v518 = vadd.f32 %v502, %v516
      %v519 = vadd.f32 %v503, %v516
      %v520 = vmul.f32 %v518, 0.088388346
      %v521 = vmul.f32 %v519, 0.088388346
      %s522 = scalar_lea.vmem %s323, 16
      %v523 = vld [vmem:[%s522] sm:$0xff]
      %v524 = vld [vmem:[%s522 + $0x8] sm:$0xff]
      %s525 = scalar_lea.vmem %s3, 128
      %v526 = vld [vmem:[%s525] sm:$0xff]
      %v527 = vld [vmem:[%s525 + $0x8] sm:$0xff]
      %v528 = vld [vmem:[%s525 + $0x10] sm:$0xff]
      %v529 = vld [vmem:[%s525 + $0x18] sm:$0xff]
      %v530 = vld [vmem:[%s525 + $0x20] sm:$0xff]
      %v531 = vld [vmem:[%s525 + $0x28] sm:$0xff]
      %v532 = vld [vmem:[%s525 + $0x30] sm:$0xff]
      %v533 = vld [vmem:[%s525 + $0x38] sm:$0xff]
      %v534 = vld [vmem:[%s525 + $0x40] sm:$0xff]
      %v535 = vld [vmem:[%s525 + $0x48] sm:$0xff]
      %v536 = vld [vmem:[%s525 + $0x50] sm:$0xff]
      %v537 = vld [vmem:[%s525 + $0x58] sm:$0xff]
      %v538 = vld [vmem:[%s525 + $0x60] sm:$0xff]
      %v539 = vld [vmem:[%s525 + $0x68] sm:$0xff]
      %v540 = vld [vmem:[%s525 + $0x70] sm:$0xff]
      %v541 = vld [vmem:[%s525 + $0x78] sm:$0xff]
      %542 = vmatpush.xpose.msra.mxu0 %v541
      %543 = vmatpush.xpose.msra.mxu0 %v540
      %544 = vmatpush.xpose.msra.mxu0 %v539
      %545 = vmatpush.xpose.msra.mxu0 %v538
      %546 = vmatpush.xpose.msra.mxu0 %v537
      %547 = vmatpush.xpose.msra.mxu0 %v536
      %548 = vmatpush.xpose.msra.mxu0 %v535
      %549 = vmatpush.xpose.msra.mxu0 %v534
      %550 = vmatpush.xpose.msra.mxu0 %v533
      %551 = vmatpush.xpose.msra.mxu0 %v532
      %552 = vmatpush.xpose.msra.mxu0 %v531
      %553 = vmatpush.xpose.msra.mxu0 %v530
      %554 = vmatpush.xpose.msra.mxu0 %v529
      %555 = vmatpush.xpose.msra.mxu0 %v528
      %556 = vmatpush.xpose.msra.mxu0 %v527
      %557 = vmatpush.xpose.msra.mxu0 %v526
      %558 = vmatmul.f32.gmra.mxu0 %v520
      %v559 = vpop.f32.mrf.mxu0
      %v560 = vadd.f32 0.0, %v559
      %561 = vmatmul.f32.gmra.mxu0 %v521
      %v562 = vpop.f32.mrf.mxu0
      %v563 = vadd.f32 0.0, %v562
      %564 = vdwg.mxu0
      %s566 = sor.u32 256, 113
      %567 = vrot.lane.b32.xlu0 %v560, %s566
      %v568 = vpop.permute.xlu0 %567
      %s570 = sor.u32 256, 121
      %571 = vrot.lane.b32.xlu0 %v563, %s570
      %v572 = vpop.permute.xlu0 %571
      %573 = vmatpush.xpose.msra.mxu0 0.0
      %574 = vmatpush.xpose.msra.mxu0 0.0
      %575 = vmatpush.xpose.msra.mxu0 0.0
      %576 = vmatpush.xpose.msra.mxu0 0.0
      %577 = vmatpush.xpose.msra.mxu0 0.0
      %578 = vmatpush.xpose.msra.mxu0 0.0
      %579 = vmatpush.xpose.msra.mxu0 0.0
      %580 = vmatpush.xpose.msra.mxu0 0.0
      %581 = vmatpush.xpose.msra.mxu0 0.0
      %582 = vmatpush.xpose.msra.mxu0 0.0
      %583 = vmatpush.xpose.msra.mxu0 0.0
      %584 = vmatpush.xpose.msra.mxu0 0.0
      %585 = vmatpush.xpose.msra.mxu0 0.0
      %586 = vmatpush.xpose.msra.mxu0 0.0
      %587 = vmatpush.xpose.msra.mxu0 %v524
      %588 = vmatpush.xpose.msra.mxu0 %v523
      %589 = vmatmul.f32.gmra.mxu0 %v511
      %v590 = vpop.f32.mrf.mxu0
      %v591 = vadd.f32 %v568, %v590
      %592 = vmatmul.f32.gmra.mxu0 %v512
      %v593 = vpop.f32.mrf.mxu0
      %v594 = vadd.f32 %v572, %v593
      %595 = vdwg.mxu0
      %v596 = vsel %vm433, %v591, -inf
      %597 = vmax.xlane.f32.xlu0 %v596
      %v598 = vpop.xlane.xlu0 %597
      %v599 = vsel %vm433, %v594, -inf
      %600 = vmax.xlane.f32.xlu0 %v599
      %v601 = vpop.xlane.xlu0 %600
      %v602 = vsub.f32 %v591, %v598
      %v603 = vsub.f32 %v594, %v601
      %v604 = vmul.f32 %v602, 1.442695
      %v605 = vpow.pop %v604
      %v606 = vmul.f32 %v603, 1.442695
      %v607 = vpow.pop %v606
      %v608 = vsel %vm433, %v605, 0.0
      %609 = vadd.xlane.f32.xlu0 %v608
      %v610 = vpop.xlane.xlu0 %609
      %v611 = vsel %vm433, %v607, 0.0
      %612 = vadd.xlane.f32.xlu0 %v611
      %v613 = vpop.xlane.xlu0 %612
      %v614 = vrcp.pop %v610
      %v615 = vrcp.pop %v613
      %v616 = vmul.f32 %v605, %v614
      %v617 = vmul.f32 %v607, %v615
      %v618 = vsel %vm464, 0.0, %v616
      %v619 = vsel %vm465, 0.0, %v617
      %s620 = scalar_lea.vmem %s328, 16
      %v621 = vld [vmem:[%s620] sm:$0xff]
      %v622 = vld [vmem:[%s620 + $0x8] sm:$0xff]
      %v624 = vsel %vm433, %v618, 0
      %v627 = vsel %vm433, %v619, 0
      %629 = vmatpush.msra.mxu0 0.0
      %630 = vmatpush.msra.mxu0 0.0
      %631 = vmatpush.msra.mxu0 0.0
      %632 = vmatpush.msra.mxu0 0.0
      %633 = vmatpush.msra.mxu0 0.0
      %634 = vmatpush.msra.mxu0 0.0
      %635 = vmatpush.msra.mxu0 0.0
      %636 = vmatpush.msra.mxu0 0.0
      %637 = vmatpush.msra.mxu0 0.0
      %638 = vmatpush.msra.mxu0 0.0
      %639 = vmatpush.msra.mxu0 0.0
      %640 = vmatpush.msra.mxu0 0.0
      %641 = vmatpush.msra.mxu0 0.0
      %642 = vmatpush.msra.mxu0 0.0
      %643 = vmatpush.msra.mxu0 %v622
      %644 = vmatpush.msra.mxu0 %v621
      %645 = vmatmul.f32.gmra.mxu0 %v624
      %v646 = vpop.f32.mrf.mxu0
      %v647 = vadd.f32 0.0, %v646
      %648 = vmatmul.f32.gmra.mxu0 %v627
      %v649 = vpop.f32.mrf.mxu0
      %v650 = vadd.f32 0.0, %v649
      %651 = vdwg.mxu0
      %s652 = scalar_lea.vmem %s338, 16
      %653 = vst [vmem:[%s652] sm:$0xff] %v647
      %654 = vst [vmem:[%s652 + $0x8] sm:$0xff] %v650
      %p655 = scmp.lt.s32.totalorder %s18, 1
      %s656 = scalar_select %p655, %s18, 1
      %s657 = smul.addr %s656, 4
      %s658 = smul.addr %s657, 8
      %s659 = scalar_lea.vmem %s7, %s658
      // Predicated region
      $region49: #{mhsa_forward.6} parent=47 // pred_check
        %p660 = pneg %p203
      $region50: #{mhsa_forward.6} parent=47 // pred_check_branch
        %662 = sbr.rel (%p660) target = $region52
      $region51: #{mhsa_forward.6} parent=47 // pred_region
        _
      $region52: #{mhsa_forward.6} parent=47 // pred_fallthru
        _
    $region48: #{mhsa_forward.6} parent=5 // pred_fallthru
      _
    %p663 = scmp.le.s32.totalorder 2, %s13
    // Predicated region
    $region53: #{mhsa_forward.6} parent=5 // pred_check
      %p664 = pneg %p663
    $region54: #{mhsa_forward.6} parent=5 // pred_check_branch
      %666 = sbr.rel (%p664) target = $region56
    $region55: #{mhsa_forward.6} parent=5 // pred_region
      %s667 = ssub.s32 %s13, 2
      // Predicated region
      $region57: #{mhsa_forward.6} parent=55 // pred_check
        %p668 = pneg %p209
      $region58: #{mhsa_forward.6} parent=55 // pred_check_branch
        %670 = sbr.rel (%p668) target = $region60
      $region59: #{mhsa_forward.6} parent=55 // pred_region
        %p671 = scmp.lt.s32.totalorder %s19, 1
        %s672 = scalar_select %p671, %s19, 1
        %s673 = smul.addr %s672, 4
        %s674 = smul.addr %s673, 8
        %s675 = scalar_lea.vmem %s7, %s674
      $region60: #{mhsa_forward.6} parent=55 // pred_fallthru
        _
    $region56: #{mhsa_forward.6} parent=5 // pred_fallthru
      _
  $region6: #{mhsa_forward.6} parent=0 // loop_footer
    %s17 = sadd.s32 1, %s13
  $region7: #{mhsa_forward.6} parent=0 // loop_footer_branch
    %12 = sbr.rel target = $region3
  $region8: #{mhsa_forward.6} parent=0 // loop_exit
    _

// kernel: mhsa_forward.7
$region0: #{mhsa_forward.7}
  #allocation0 [shape = 'u32[]', space=smem, size = 0x4, offset = 0x4, fixed_abs, tag = 'smem constant byte address 0x4 - core index']
  #allocation1 [shape = 'u32[72,128]{1,0:T(1,128)}', space=vmem, size = 0x9000, scoped, tag = 'internal scratch']
  %s0 = inlined_call_operand.vmem [shape: f32[32,256], index: 0, kind: input, shape index: {}]
  %s1 = inlined_call_operand.vmem [shape: f32[256,256], index: 1, kind: input, shape index: {}]
  %s2 = inlined_call_operand.vmem [shape: f32[1,256], index: 2, kind: input, shape index: {}]
  %s3 = inlined_call_operand.vmem [shape: f32[32,256], index: 3, kind: input, shape index: {}]
  %s4 = inlined_call_operand.hbm [shape: f32[32,256], index: 4, kind: output, shape index: {}]
  %s5 = sld [smem:[#allocation0]]
  $region26: #{mhsa_forward.7} parent=0
    _
  %s7 = ssub.s32 1, %s5
  %s8 = scalar_select 0, %s7, %s5
  $region1: #{mhsa_forward.7} parent=0
    #allocation2 [shape = 'u8[32768]{0}', space=vmem, size = 0x8000, scoped, tag = 'output window, operand 0, single buffered']
    #allocation3 [shape = 's32[1]{0}', space=sflag, size = 0x4, scoped, tag = 'scoped memory for mhsa_forward.7']
    %9 = vsyncpa [#allocation3], 0
    // Predicated region
    $region2: #{mhsa_forward.7} parent=1 // pred_check
      _
    $region3: #{mhsa_forward.7} parent=1 // pred_check_branch
      %11 = sbr.rel (0) target = $region5
    $region4: #{mhsa_forward.7} parent=1 // pred_region
      _
    $region5: #{mhsa_forward.7} parent=1 // pred_fallthru
      _
    // Predicated region
    $region6: #{mhsa_forward.7} parent=1 // pred_check
      _
    $region7: #{mhsa_forward.7} parent=1 // pred_check_branch
      %13 = sbr.rel (0) target = $region9
    $region8: #{mhsa_forward.7} parent=1 // pred_region
      _
    $region9: #{mhsa_forward.7} parent=1 // pred_fallthru
      _
    // Predicated region
    $region10: #{mhsa_forward.7} parent=1 // pred_check
      _
    $region11: #{mhsa_forward.7} parent=1 // pred_check_branch
      %15 = sbr.rel (0) target = $region13
    $region12: #{mhsa_forward.7} parent=1 // pred_region
      _
    $region13: #{mhsa_forward.7} parent=1 // pred_fallthru
      _
    // Predicated region
    $region14: #{mhsa_forward.7} parent=1 // pred_check
      _
    $region15: #{mhsa_forward.7} parent=1 // pred_check_branch
      %17 = sbr.rel (0) target = $region17
    $region16: #{mhsa_forward.7} parent=1 // pred_region
      _
    $region17: #{mhsa_forward.7} parent=1 // pred_fallthru
      _
    %v18 = vld [vmem:[%s0] sm:$0xff]
    %v19 = vld [vmem:[%s0 + $0x8] sm:$0xff]
    %v20 = vld [vmem:[%s0 + $0x10] sm:$0xff]
    %v21 = vld [vmem:[%s0 + $0x18] sm:$0xff]
    %v22 = vld [vmem:[%s0 + $0x20] sm:$0xff]
    %v23 = vld [vmem:[%s0 + $0x28] sm:$0xff]
    %v24 = vld [vmem:[%s0 + $0x30] sm:$0xff]
    %v25 = vld [vmem:[%s0 + $0x38] sm:$0xff]
    %v26 = vld [vmem:[%s1] sm:$0xff]
    %v27 = vld [vmem:[%s1 + $0x8] sm:$0xff]
    %v28 = vld [vmem:[%s1 + $0x10] sm:$0xff]
    %v29 = vld [vmem:[%s1 + $0x18] sm:$0xff]
    %v30 = vld [vmem:[%s1 + $0x20] sm:$0xff]
    %v31 = vld [vmem:[%s1 + $0x28] sm:$0xff]
    %v32 = vld [vmem:[%s1 + $0x30] sm:$0xff]
    %v33 = vld [vmem:[%s1 + $0x38] sm:$0xff]
    %v34 = vld [vmem:[%s1 + $0x40] sm:$0xff]
    %v35 = vld [vmem:[%s1 + $0x48] sm:$0xff]
    %v36 = vld [vmem:[%s1 + $0x50] sm:$0xff]
    %v37 = vld [vmem:[%s1 + $0x58] sm:$0xff]
    %v38 = vld [vmem:[%s1 + $0x60] sm:$0xff]
    %v39 = vld [vmem:[%s1 + $0x68] sm:$0xff]
    %v40 = vld [vmem:[%s1 + $0x70] sm:$0xff]
    %v41 = vld [vmem:[%s1 + $0x78] sm:$0xff]
    %v42 = vld [vmem:[%s1 + $0x80] sm:$0xff]
    %v43 = vld [vmem:[%s1 + $0x88] sm:$0xff]
    %v44 = vld [vmem:[%s1 + $0x90] sm:$0xff]
    %v45 = vld [vmem:[%s1 + $0x98] sm:$0xff]
    %v46 = vld [vmem:[%s1 + $0xa0] sm:$0xff]
    %v47 = vld [vmem:[%s1 + $0xa8] sm:$0xff]
    %v48 = vld [vmem:[%s1 + $0xb0] sm:$0xff]
    %v49 = vld [vmem:[%s1 + $0xb8] sm:$0xff]
    %v50 = vld [vmem:[%s1 + $0xc0] sm:$0xff]
    %v51 = vld [vmem:[%s1 + $0xc8] sm:$0xff]
    %v52 = vld [vmem:[%s1 + $0xd0] sm:$0xff]
    %v53 = vld [vmem:[%s1 + $0xd8] sm:$0xff]
    %v54 = vld [vmem:[%s1 + $0xe0] sm:$0xff]
    %v55 = vld [vmem:[%s1 + $0xe8] sm:$0xff]
    %v56 = vld [vmem:[%s1 + $0xf0] sm:$0xff]
    %v57 = vld [vmem:[%s1 + $0xf8] sm:$0xff]
    %v58 = vld [vmem:[%s1 + $0x100] sm:$0xff]
    %v59 = vld [vmem:[%s1 + $0x108] sm:$0xff]
    %v60 = vld [vmem:[%s1 + $0x110] sm:$0xff]
    %v61 = vld [vmem:[%s1 + $0x118] sm:$0xff]
    %v62 = vld [vmem:[%s1 + $0x120] sm:$0xff]
    %v63 = vld [vmem:[%s1 + $0x128] sm:$0xff]
    %v64 = vld [vmem:[%s1 + $0x130] sm:$0xff]
    %v65 = vld [vmem:[%s1 + $0x138] sm:$0xff]
    %v66 = vld [vmem:[%s1 + $0x140] sm:$0xff]
    %v67 = vld [vmem:[%s1 + $0x148] sm:$0xff]
    %v68 = vld [vmem:[%s1 + $0x150] sm:$0xff]
    %v69 = vld [vmem:[%s1 + $0x158] sm:$0xff]
    %v70 = vld [vmem:[%s1 + $0x160] sm:$0xff]
    %v71 = vld [vmem:[%s1 + $0x168] sm:$0xff]
    %v72 = vld [vmem:[%s1 + $0x170] sm:$0xff]
    %v73 = vld [vmem:[%s1 + $0x178] sm:$0xff]
    %v74 = vld [vmem:[%s1 + $0x180] sm:$0xff]
    %v75 = vld [vmem:[%s1 + $0x188] sm:$0xff]
    %v76 = vld [vmem:[%s1 + $0x190] sm:$0xff]
    %v77 = vld [vmem:[%s1 + $0x198] sm:$0xff]
    %v78 = vld [vmem:[%s1 + $0x1a0] sm:$0xff]
    %v79 = vld [vmem:[%s1 + $0x1a8] sm:$0xff]
    %v80 = vld [vmem:[%s1 + $0x1b0] sm:$0xff]
    %v81 = vld [vmem:[%s1 + $0x1b8] sm:$0xff]
    %v82 = vld [vmem:[%s1 + $0x1c0] sm:$0xff]
    %v83 = vld [vmem:[%s1 + $0x1c8] sm:$0xff]
    %v84 = vld [vmem:[%s1 + $0x1d0] sm:$0xff]
    %v85 = vld [vmem:[%s1 + $0x1d8] sm:$0xff]
    %v86 = vld [vmem:[%s1 + $0x1e0] sm:$0xff]
    %v87 = vld [vmem:[%s1 + $0x1e8] sm:$0xff]
    %v88 = vld [vmem:[%s1 + $0x1f0] sm:$0xff]
    %v89 = vld [vmem:[%s1 + $0x1f8] sm:$0xff]
    %v90 = vld [vmem:[%s2] sm:$0x3]
    %v92 = vperm.slane %v90, 0
    %v93 = vperm.slane %v90, 1
    %96 = vmatpush.msra.mxu0 %v56
    %97 = vmatpush.msra.mxu0 %v54
    %98 = vmatpush.msra.mxu0 %v52
    %99 = vmatpush.msra.mxu0 %v50
    %100 = vmatpush.msra.mxu0 %v48
    %101 = vmatpush.msra.mxu0 %v46
    %102 = vmatpush.msra.mxu0 %v44
    %103 = vmatpush.msra.mxu0 %v42
    %104 = vmatpush.msra.mxu0 %v40
    %105 = vmatpush.msra.mxu0 %v38
    %106 = vmatpush.msra.mxu0 %v36
    %107 = vmatpush.msra.mxu0 %v34
    %108 = vmatpush.msra.mxu0 %v32
    %109 = vmatpush.msra.mxu0 %v30
    %110 = vmatpush.msra.mxu0 %v28
    %111 = vmatpush.msra.mxu0 %v26
    %112 = vmatmul.f32.gmra.mxu0 %v18
    %v113 = vpop.f32.mrf.mxu0
    %v114 = vadd.f32 %v92, %v113
    %115 = vmatmul.f32.gmra.mxu0 %v20
    %v116 = vpop.f32.mrf.mxu0
    %v117 = vadd.f32 %v92, %v116
    %118 = vmatmul.f32.gmra.mxu0 %v22
    %v119 = vpop.f32.mrf.mxu0
    %v120 = vadd.f32 %v92, %v119
    %121 = vmatmul.f32.gmra.mxu0 %v24
    %v122 = vpop.f32.mrf.mxu0
    %v123 = vadd.f32 %v92, %v122
    %124 = vdwg.mxu0
    %125 = vmatpush.msra.mxu0 %v88
    %126 = vmatpush.msra.mxu0 %v86
    %127 = vmatpush.msra.mxu0 %v84
    %128 = vmatpush.msra.mxu0 %v82
    %129 = vmatpush.msra.mxu0 %v80
    %130 = vmatpush.msra.mxu0 %v78
    %131 = vmatpush.msra.mxu0 %v76
    %132 = vmatpush.msra.mxu0 %v74
    %133 = vmatpush.msra.mxu0 %v72
    %134 = vmatpush.msra.mxu0 %v70
    %135 = vmatpush.msra.mxu0 %v68
    %136 = vmatpush.msra.mxu0 %v66
    %137 = vmatpush.msra.mxu0 %v64
    %138 = vmatpush.msra.mxu0 %v62
    %139 = vmatpush.msra.mxu0 %v60
    %140 = vmatpush.msra.mxu0 %v58
    %141 = vmatmul.f32.gmra.mxu0 %v19
    %v142 = vpop.f32.mrf.mxu0
    %v143 = vadd.f32 %v114, %v142
    %144 = vmatmul.f32.gmra.mxu0 %v21
    %v145 = vpop.f32.mrf.mxu0
    %v146 = vadd.f32 %v117, %v145
    %147 = vmatmul.f32.gmra.mxu0 %v23
    %v148 = vpop.f32.mrf.mxu0
    %v149 = vadd.f32 %v120, %v148
    %150 = vmatmul.f32.gmra.mxu0 %v25
    %v151 = vpop.f32.mrf.mxu0
    %v152 = vadd.f32 %v123, %v151
    %153 = vdwg.mxu0
    %154 = vmatpush.msra.mxu0 %v57
    %155 = vmatpush.msra.mxu0 %v55
    %156 = vmatpush.msra.mxu0 %v53
    %157 = vmatpush.msra.mxu0 %v51
    %158 = vmatpush.msra.mxu0 %v49
    %159 = vmatpush.msra.mxu0 %v47
    %160 = vmatpush.msra.mxu0 %v45
    %161 = vmatpush.msra.mxu0 %v43
    %162 = vmatpush.msra.mxu0 %v41
    %163 = vmatpush.msra.mxu0 %v39
    %164 = vmatpush.msra.mxu0 %v37
    %165 = vmatpush.msra.mxu0 %v35
    %166 = vmatpush.msra.mxu0 %v33
    %167 = vmatpush.msra.mxu0 %v31
    %168 = vmatpush.msra.mxu0 %v29
    %169 = vmatpush.msra.mxu0 %v27
    %170 = vmatmul.f32.gmra.mxu0 %v18
    %v171 = vpop.f32.mrf.mxu0
    %v172 = vadd.f32 %v93, %v171
    %173 = vmatmul.f32.gmra.mxu0 %v20
    %v174 = vpop.f32.mrf.mxu0
    %v175 = vadd.f32 %v93, %v174
    %176 = vmatmul.f32.gmra.mxu0 %v22
    %v177 = vpop.f32.mrf.mxu0
    %v178 = vadd.f32 %v93, %v177
    %179 = vmatmul.f32.gmra.mxu0 %v24
    %v180 = vpop.f32.mrf.mxu0
    %v181 = vadd.f32 %v93, %v180
    %182 = vdwg.mxu0
    %183 = vmatpush.msra.mxu0 %v89
    %184 = vmatpush.msra.mxu0 %v87
    %185 = vmatpush.msra.mxu0 %v85
    %186 = vmatpush.msra.mxu0 %v83
    %187 = vmatpush.msra.mxu0 %v81
    %188 = vmatpush.msra.mxu0 %v79
    %189 = vmatpush.msra.mxu0 %v77
    %190 = vmatpush.msra.mxu0 %v75
    %191 = vmatpush.msra.mxu0 %v73
    %192 = vmatpush.msra.mxu0 %v71
    %193 = vmatpush.msra.mxu0 %v69
    %194 = vmatpush.msra.mxu0 %v67
    %195 = vmatpush.msra.mxu0 %v65
    %196 = vmatpush.msra.mxu0 %v63
    %197 = vmatpush.msra.mxu0 %v61
    %198 = vmatpush.msra.mxu0 %v59
    %199 = vmatmul.f32.gmra.mxu0 %v19
    %v200 = vpop.f32.mrf.mxu0
    %v201 = vadd.f32 %v172, %v200
    %202 = vmatmul.f32.gmra.mxu0 %v21
    %v203 = vpop.f32.mrf.mxu0
    %v204 = vadd.f32 %v175, %v203
    %205 = vmatmul.f32.gmra.mxu0 %v23
    %v206 = vpop.f32.mrf.mxu0
    %v207 = vadd.f32 %v178, %v206
    %208 = vmatmul.f32.gmra.mxu0 %v25
    %v209 = vpop.f32.mrf.mxu0
    %v210 = vadd.f32 %v181, %v209
    %211 = vdwg.mxu0
    %v212 = vld [vmem:[%s3] sm:$0xff]
    %v213 = vld [vmem:[%s3 + $0x8] sm:$0xff]
    %v214 = vld [vmem:[%s3 + $0x10] sm:$0xff]
    %v215 = vld [vmem:[%s3 + $0x18] sm:$0xff]
    %v216 = vld [vmem:[%s3 + $0x20] sm:$0xff]
    %v217 = vld [vmem:[%s3 + $0x28] sm:$0xff]
    %v218 = vld [vmem:[%s3 + $0x30] sm:$0xff]
    %v219 = vld [vmem:[%s3 + $0x38] sm:$0xff]
    %v220 = vadd.f32 %v143, %v212
    %v221 = vadd.f32 %v201, %v213
    %v222 = vadd.f32 %v146, %v214
    %v223 = vadd.f32 %v204, %v215
    %v224 = vadd.f32 %v149, %v216
    %v225 = vadd.f32 %v207, %v217
    %v226 = vadd.f32 %v152, %v218
    %v227 = vadd.f32 %v210, %v219
    %228 = vst [vmem:[#allocation2] sm:$0xff] %v220
    %229 = vst [vmem:[#allocation2 + $0x8] sm:$0xff] %v221
    %230 = vst [vmem:[#allocation2 + $0x10] sm:$0xff] %v222
    %231 = vst [vmem:[#allocation2 + $0x18] sm:$0xff] %v223
    %232 = vst [vmem:[#allocation2 + $0x20] sm:$0xff] %v224
    %233 = vst [vmem:[#allocation2 + $0x28] sm:$0xff] %v225
    %234 = vst [vmem:[#allocation2 + $0x30] sm:$0xff] %v226
    %235 = vst [vmem:[#allocation2 + $0x38] sm:$0xff] %v227
    // Predicated region
    $region18: #{mhsa_forward.7} parent=1 // pred_check
      _
    $region19: #{mhsa_forward.7} parent=1 // pred_check_branch
      %237 = sbr.rel (0) target = $region21
    $region20: #{mhsa_forward.7} parent=1 // pred_region
      %239 = vsyncadd [#allocation3], 0
      %s240 = sshll.u32 [#allocation2], 4
      %s241 = int_to_ptr.vmem [resolvable:$true] %s240
      %s242 = sshll.u32 %s4, 4
      %s243 = int_to_ptr.hbm [resolvable:$true] %s242
      %248 = dma.vmem_to_hbm [thread:$0]  %s241, 1024, %s243, [#allocation3], 256, 256, 16
    $region21: #{mhsa_forward.7} parent=1 // pred_fallthru
      _
    // Predicated region
    $region22: #{mhsa_forward.7} parent=1 // pred_check
      _
    $region23: #{mhsa_forward.7} parent=1 // pred_check_branch
      %250 = sbr.rel (0) target = $region25
    $region24: #{mhsa_forward.7} parent=1 // pred_region
      %252 = dma.done [#allocation3], 1024
    $region25: #{mhsa_forward.7} parent=1 // pred_fallthru
      _
    %253 = vsyncpa [#allocation3], 1

</llo_original>
